<compile_context>
chip_gen: v7x
topology: tpu7x:2x2x1
jax: 0.10.0
libtpu: 0.0.40
codegen_flags: <defaults>
</compile_context>

<pallas_src>
import functools

import jax
import jax.numpy as jnp
from jax.experimental import pallas as pl
from jax.experimental.pallas import tpu as pltpu

SUBLANE = 8
LANE = 128


def _round_up(x, m):
    return (x + m - 1) // m * m


# --------------------------- fused forward kernel ---------------------------
def lstm_regression_kernel(
    x_ref,        # (T*Bp, D)     f32  padded, time-major rows
    wih_ref,      # (D, 4H)       f32  W_ih^T
    whh_ref,      # (H, 4H)       f32  W_hh^T
    b_ref,        # (1, 4H)       f32  b_ih + b_hh
    mask_ref,     # (T*Bp, H)     f32  pre-scaled dropout mask (0 or 1/(1-p))
    wlin_ref,     # (H, Opad)     f32  W_lin^T zero-padded to lane-dense Opad
    blin_ref,     # (1, Opad)     f32
    out_ref,      # (T*Bp, Opad)  f32
    gx_sc,        # VMEM (T*Bp, 4H)  hoisted input-projection gates
    y_sc,         # VMEM (T*Bp, H)   LSTM output slab
    h_sc,         # VMEM (Bp, H)     hidden state
    c_sc,         # VMEM (Bp, H)     cell state
    *, T, Bp, H,
):
    # ---- hoisted input projection: one batched MXU matmul over all timesteps.
    gx_sc[...] = (
        jnp.dot(x_ref[...], wih_ref[...], preferred_element_type=jnp.float32)
        + b_ref[...]
    )

    h_sc[...] = jnp.zeros_like(h_sc)
    c_sc[...] = jnp.zeros_like(c_sc)

    # ---- sequential recurrence, fully unrolled (T is small & static).
    # TODO(synk): for long sequences switch to pl.loop(0, T) instead of full unroll.
    for t in range(T):
        row = t * Bp  # static, sublane-aligned (Bp is a multiple of 8)
        gates = gx_sc[pl.ds(row, Bp), :] + jnp.dot(
            h_sc[...], whh_ref[...], preferred_element_type=jnp.float32
        )
        # PyTorch nn.LSTM gate order: i, f, g, o
        i_g = jax.nn.sigmoid(gates[:, 0 * H:1 * H])
        f_g = jax.nn.sigmoid(gates[:, 1 * H:2 * H])
        g_g = jnp.tanh(gates[:, 2 * H:3 * H])
        o_g = jax.nn.sigmoid(gates[:, 3 * H:4 * H])

        c_new = f_g * c_sc[...] + i_g * g_g
        h_new = o_g * jnp.tanh(c_new)

        c_sc[...] = c_new
        h_sc[...] = h_new
        y_sc[pl.ds(row, Bp), :] = h_new

    # ---- fused head: dropout (training=True) -> ReLU -> Linear, one lane-dense store.
    a = jnp.maximum(y_sc[...] * mask_ref[...], 0.0)
    out_ref[...] = (
        jnp.dot(a, wlin_ref[...], preferred_element_type=jnp.float32) + blin_ref[...]
    ).astype(out_ref.dtype)


# --------------------------------- wrapper -----------------------------------
def lstm_regression_forward(x, params, hidden_dim, output_dim, *, drop_p=0.125, rng_key):
    """x: (T, B, D) float32 -> (T, B, output_dim) float32 (dropout always on, as in the module)."""
    T, B, D = x.shape
    H = hidden_dim
    Bp = _round_up(max(B, SUBLANE), SUBLANE)          # pad batch to full sublane group
    Opad = _round_up(max(output_dim, LANE), LANE)     # lane-dense output slab

    # Pad batch; padded rows are computed independently and discarded at the end.
    x_pad = jnp.zeros((T, Bp, D), jnp.float32).at[:, :B, :].set(x)
    x2d = x_pad.reshape(T * Bp, D)

    # Pre-scaled dropout mask, matches F.dropout(p, training=True).
    keep = jax.random.bernoulli(rng_key, 1.0 - drop_p, (T * Bp, H))
    mask = keep.astype(jnp.float32) * jnp.float32(1.0 / (1.0 - drop_p))

    # Lane-dense head weights (zero-padded extra output columns).
    wlin_pad = jnp.zeros((H, Opad), jnp.float32).at[:, :output_dim].set(params["w_lin_t"])
    blin_pad = jnp.zeros((1, Opad), jnp.float32).at[:, :output_dim].set(params["b_lin"])

    kernel = functools.partial(lstm_regression_kernel, T=T, Bp=Bp, H=H)
    out2d = pl.pallas_call(
        kernel,
        out_shape=jax.ShapeDtypeStruct((T * Bp, Opad), jnp.float32),
        in_specs=[pl.BlockSpec(memory_space=pltpu.MemorySpace.VMEM)] * 7,
        out_specs=pl.BlockSpec(memory_space=pltpu.MemorySpace.VMEM),
        scratch_shapes=[
            pltpu.VMEM((T * Bp, 4 * H), jnp.float32),   # gx: hoisted input projection
            pltpu.VMEM((T * Bp, H), jnp.float32),       # y:  LSTM output slab
            pltpu.VMEM((Bp, H), jnp.float32),           # h state
            pltpu.VMEM((Bp, H), jnp.float32),           # c state
        ],
    )(x2d, params["w_ih_t"], params["w_hh_t"], params["b_lstm"], mask, wlin_pad, blin_pad)

    return out2d.reshape(T, Bp, Opad)[:, :B, :output_dim]


def init_params(key, input_dim, hidden_dim, output_dim):
    k1, k2, k3, k4, k5, k6 = jax.random.split(key, 6)
    s_lstm = 1.0 / jnp.sqrt(hidden_dim)
    # PyTorch stores weight_ih_l0 as (4H, D); pre-transpose to (D, 4H) for x @ W.
    w_ih = jax.random.uniform(k1, (4 * hidden_dim, input_dim), jnp.float32, -s_lstm, s_lstm)
    w_hh = jax.random.uniform(k2, (4 * hidden_dim, hidden_dim), jnp.float32, -s_lstm, s_lstm)
    b_ih = jax.random.uniform(k3, (4 * hidden_dim,), jnp.float32, -s_lstm, s_lstm)
    b_hh = jax.random.uniform(k4, (4 * hidden_dim,), jnp.float32, -s_lstm, s_lstm)
    s_lin = 1.0 / jnp.sqrt(hidden_dim)
    w_lin = jax.random.uniform(k5, (output_dim, hidden_dim), jnp.float32, -s_lin, s_lin)
    b_lin = jax.random.uniform(k6, (output_dim,), jnp.float32, -s_lin, s_lin)
    return {
        "w_ih_t": w_ih.T,                          # (D, 4H)
        "w_hh_t": w_hh.T,                          # (H, 4H)
        "b_lstm": (b_ih + b_hh).reshape(1, -1),    # (1, 4H)
        "w_lin_t": w_lin.T,                        # (H, O)
        "b_lin": b_lin.reshape(1, -1),             # (1, O)
    }


if __name__ == "__main__":
    # small shapes: seq=8, batch=2, input_dim=16, hidden=32, output_dim=4
    T, B, D, H, O = 8, 2, 16, 32, 4
    key = jax.random.PRNGKey(0)
    kx, kp, kd = jax.random.split(key, 3)
    x = jax.random.normal(kx, (T, B, D), dtype=jnp.float32)
    params = init_params(kp, D, H, O)

    out = lstm_regression_forward(x, params, hidden_dim=H, output_dim=O,
                                  drop_p=0.125, rng_key=kd)
    out = jax.block_until_ready(out)
    assert out.shape == (T, B, O), out.shape
    assert jnp.all(jnp.isfinite(out))
    print("KERNEL_OK")
</pallas_src>

<mosaic_0001>
module attributes {stable_mosaic.version = 11 : i64} {
  func.func @lstm_regression_kernel(%arg0: memref<64x16xf32, #tpu.memory_space<vmem>>, %arg1: memref<16x128xf32, #tpu.memory_space<vmem>>, %arg2: memref<32x128xf32, #tpu.memory_space<vmem>>, %arg3: memref<1x128xf32, #tpu.memory_space<vmem>>, %arg4: memref<64x32xf32, #tpu.memory_space<vmem>>, %arg5: memref<32x128xf32, #tpu.memory_space<vmem>>, %arg6: memref<1x128xf32, #tpu.memory_space<vmem>>, %arg7: memref<64x128xf32, #tpu.memory_space<vmem>>, %arg8: memref<64x128xf32, #tpu.memory_space<vmem>>, %arg9: memref<64x32xf32, #tpu.memory_space<vmem>>, %arg10: memref<8x32xf32, #tpu.memory_space<vmem>>, %arg11: memref<8x32xf32, #tpu.memory_space<vmem>>) attributes {dimension_semantics = [], scalar_prefetch = 0 : i64, scratch_operands = 4 : i64, tpu.core_type = #tpu.core_type<tc>} {
    %c0 = arith.constant 0 : index
    %c0_0 = arith.constant 0 : index
    %0 = vector.load %arg0[%c0, %c0_0] : memref<64x16xf32, #tpu.memory_space<vmem>>, vector<64x16xf32>
    %c0_1 = arith.constant 0 : index
    %c0_2 = arith.constant 0 : index
    %1 = vector.load %arg1[%c0_1, %c0_2] : memref<16x128xf32, #tpu.memory_space<vmem>>, vector<16x128xf32>
    %cst = arith.constant dense<0.000000e+00> : vector<64x128xf32>
    %2 = tpu.matmul %0, %1, %cst {dimension_numbers = #tpu.dot_dimension_numbers<[1], [0], [0], [1], [0, 0, 1, 1], [], []>} : vector<64x16xf32>, vector<16x128xf32>, vector<64x128xf32> -> vector<64x128xf32>
    %c0_3 = arith.constant 0 : index
    %c0_4 = arith.constant 0 : index
    %3 = vector.load %arg3[%c0_3, %c0_4] : memref<1x128xf32, #tpu.memory_space<vmem>>, vector<1x128xf32>
    %4 = vector.broadcast %3 : vector<1x128xf32> to vector<64x128xf32>
    %5 = arith.addf %2, %4 : vector<64x128xf32>
    %c0_5 = arith.constant 0 : index
    %c0_6 = arith.constant 0 : index
    %6 = vector.load %arg8[%c0_5, %c0_6] : memref<64x128xf32, #tpu.memory_space<vmem>>, vector<64x128xf32>
    tpu.vector_store %arg8[%c0_5, %c0_6], %5 {strides = array<i32>} : memref<64x128xf32, #tpu.memory_space<vmem>>, vector<64x128xf32>,
    %cst_7 = arith.constant 0.000000e+00 : f32
    %7 = vector.broadcast %cst_7 : f32 to vector<8x32xf32>
    %c0_8 = arith.constant 0 : index
    %c0_9 = arith.constant 0 : index
    %8 = vector.load %arg10[%c0_8, %c0_9] : memref<8x32xf32, #tpu.memory_space<vmem>>, vector<8x32xf32>
    tpu.vector_store %arg10[%c0_8, %c0_9], %7 {strides = array<i32>} : memref<8x32xf32, #tpu.memory_space<vmem>>, vector<8x32xf32>,
    %cst_10 = arith.constant 0.000000e+00 : f32
    %9 = vector.broadcast %cst_10 : f32 to vector<8x32xf32>
    %c0_11 = arith.constant 0 : index
    %c0_12 = arith.constant 0 : index
    %10 = vector.load %arg11[%c0_11, %c0_12] : memref<8x32xf32, #tpu.memory_space<vmem>>, vector<8x32xf32>
    tpu.vector_store %arg11[%c0_11, %c0_12], %9 {strides = array<i32>} : memref<8x32xf32, #tpu.memory_space<vmem>>, vector<8x32xf32>,
    %c0_13 = arith.constant 0 : index
    %c0_14 = arith.constant 0 : index
    %11 = vector.load %arg8[%c0_13, %c0_14] : memref<64x128xf32, #tpu.memory_space<vmem>>, vector<8x128xf32>
    %c0_15 = arith.constant 0 : index
    %c0_16 = arith.constant 0 : index
    %12 = vector.load %arg10[%c0_15, %c0_16] : memref<8x32xf32, #tpu.memory_space<vmem>>, vector<8x32xf32>
    %c0_17 = arith.constant 0 : index
    %c0_18 = arith.constant 0 : index
    %13 = vector.load %arg2[%c0_17, %c0_18] : memref<32x128xf32, #tpu.memory_space<vmem>>, vector<32x128xf32>
    %cst_19 = arith.constant dense<0.000000e+00> : vector<8x128xf32>
    %14 = tpu.matmul %12, %13, %cst_19 {dimension_numbers = #tpu.dot_dimension_numbers<[1], [0], [0], [1], [0, 0, 1, 1], [], []>} : vector<8x32xf32>, vector<32x128xf32>, vector<8x128xf32> -> vector<8x128xf32>
    %15 = arith.addf %11, %14 : vector<8x128xf32>
    %16 = vector.extract_strided_slice %15 {offsets = [0, 0], sizes = [8, 32], strides = [1, 1]} : vector<8x128xf32> to vector<8x32xf32>
    %17 = arith.negf %16 : vector<8x32xf32>
    %18 = math.exp %17 : vector<8x32xf32>
    %cst_20 = arith.constant 1.000000e+00 : f32
    %19 = vector.broadcast %cst_20 : f32 to vector<8x32xf32>
    %20 = arith.addf %19, %18 : vector<8x32xf32>
    %21 = arith.divf %19, %20 : vector<8x32xf32>
    %22 = vector.extract_strided_slice %15 {offsets = [0, 32], sizes = [8, 32], strides = [1, 1]} : vector<8x128xf32> to vector<8x32xf32>
    %23 = arith.negf %22 : vector<8x32xf32>
    %24 = math.exp %23 : vector<8x32xf32>
    %cst_21 = arith.constant 1.000000e+00 : f32
    %25 = vector.broadcast %cst_21 : f32 to vector<8x32xf32>
    %26 = arith.addf %25, %24 : vector<8x32xf32>
    %27 = arith.divf %25, %26 : vector<8x32xf32>
    %28 = vector.extract_strided_slice %15 {offsets = [0, 64], sizes = [8, 32], strides = [1, 1]} : vector<8x128xf32> to vector<8x32xf32>
    %29 = math.tanh %28 : vector<8x32xf32>
    %30 = vector.extract_strided_slice %15 {offsets = [0, 96], sizes = [8, 32], strides = [1, 1]} : vector<8x128xf32> to vector<8x32xf32>
    %31 = arith.negf %30 : vector<8x32xf32>
    %32 = math.exp %31 : vector<8x32xf32>
    %cst_22 = arith.constant 1.000000e+00 : f32
    %33 = vector.broadcast %cst_22 : f32 to vector<8x32xf32>
    %34 = arith.addf %33, %32 : vector<8x32xf32>
    %35 = arith.divf %33, %34 : vector<8x32xf32>
    %c0_23 = arith.constant 0 : index
    %c0_24 = arith.constant 0 : index
    %36 = vector.load %arg11[%c0_23, %c0_24] : memref<8x32xf32, #tpu.memory_space<vmem>>, vector<8x32xf32>
    %37 = arith.mulf %27, %36 : vector<8x32xf32>
    %38 = arith.mulf %21, %29 : vector<8x32xf32>
    %39 = arith.addf %37, %38 : vector<8x32xf32>
    %40 = math.tanh %39 : vector<8x32xf32>
    %41 = arith.mulf %35, %40 : vector<8x32xf32>
    %c0_25 = arith.constant 0 : index
    %c0_26 = arith.constant 0 : index
    %42 = vector.load %arg11[%c0_25, %c0_26] : memref<8x32xf32, #tpu.memory_space<vmem>>, vector<8x32xf32>
    tpu.vector_store %arg11[%c0_25, %c0_26], %39 {strides = array<i32>} : memref<8x32xf32, #tpu.memory_space<vmem>>, vector<8x32xf32>,
    %c0_27 = arith.constant 0 : index
    %c0_28 = arith.constant 0 : index
    %43 = vector.load %arg10[%c0_27, %c0_28] : memref<8x32xf32, #tpu.memory_space<vmem>>, vector<8x32xf32>
    tpu.vector_store %arg10[%c0_27, %c0_28], %41 {strides = array<i32>} : memref<8x32xf32, #tpu.memory_space<vmem>>, vector<8x32xf32>,
    %c0_29 = arith.constant 0 : index
    %c0_30 = arith.constant 0 : index
    %44 = vector.load %arg9[%c0_29, %c0_30] : memref<64x32xf32, #tpu.memory_space<vmem>>, vector<8x32xf32>
    tpu.vector_store %arg9[%c0_29, %c0_30], %41 {strides = array<i32>} : memref<64x32xf32, #tpu.memory_space<vmem>>, vector<8x32xf32>,
    %c8 = arith.constant 8 : index
    %c0_31 = arith.constant 0 : index
    %45 = vector.load %arg8[%c8, %c0_31] : memref<64x128xf32, #tpu.memory_space<vmem>>, vector<8x128xf32>
    %c0_32 = arith.constant 0 : index
    %c0_33 = arith.constant 0 : index
    %46 = vector.load %arg10[%c0_32, %c0_33] : memref<8x32xf32, #tpu.memory_space<vmem>>, vector<8x32xf32>
    %c0_34 = arith.constant 0 : index
    %c0_35 = arith.constant 0 : index
    %47 = vector.load %arg2[%c0_34, %c0_35] : memref<32x128xf32, #tpu.memory_space<vmem>>, vector<32x128xf32>
    %cst_36 = arith.constant dense<0.000000e+00> : vector<8x128xf32>
    %48 = tpu.matmul %46, %47, %cst_36 {dimension_numbers = #tpu.dot_dimension_numbers<[1], [0], [0], [1], [0, 0, 1, 1], [], []>} : vector<8x32xf32>, vector<32x128xf32>, vector<8x128xf32> -> vector<8x128xf32>
    %49 = arith.addf %45, %48 : vector<8x128xf32>
    %50 = vector.extract_strided_slice %49 {offsets = [0, 0], sizes = [8, 32], strides = [1, 1]} : vector<8x128xf32> to vector<8x32xf32>
    %51 = arith.negf %50 : vector<8x32xf32>
    %52 = math.exp %51 : vector<8x32xf32>
    %cst_37 = arith.constant 1.000000e+00 : f32
    %53 = vector.broadcast %cst_37 : f32 to vector<8x32xf32>
    %54 = arith.addf %53, %52 : vector<8x32xf32>
    %55 = arith.divf %53, %54 : vector<8x32xf32>
    %56 = vector.extract_strided_slice %49 {offsets = [0, 32], sizes = [8, 32], strides = [1, 1]} : vector<8x128xf32> to vector<8x32xf32>
    %57 = arith.negf %56 : vector<8x32xf32>
    %58 = math.exp %57 : vector<8x32xf32>
    %cst_38 = arith.constant 1.000000e+00 : f32
    %59 = vector.broadcast %cst_38 : f32 to vector<8x32xf32>
    %60 = arith.addf %59, %58 : vector<8x32xf32>
    %61 = arith.divf %59, %60 : vector<8x32xf32>
    %62 = vector.extract_strided_slice %49 {offsets = [0, 64], sizes = [8, 32], strides = [1, 1]} : vector<8x128xf32> to vector<8x32xf32>
    %63 = math.tanh %62 : vector<8x32xf32>
    %64 = vector.extract_strided_slice %49 {offsets = [0, 96], sizes = [8, 32], strides = [1, 1]} : vector<8x128xf32> to vector<8x32xf32>
    %65 = arith.negf %64 : vector<8x32xf32>
    %66 = math.exp %65 : vector<8x32xf32>
    %cst_39 = arith.constant 1.000000e+00 : f32
    %67 = vector.broadcast %cst_39 : f32 to vector<8x32xf32>
    %68 = arith.addf %67, %66 : vector<8x32xf32>
    %69 = arith.divf %67, %68 : vector<8x32xf32>
    %c0_40 = arith.constant 0 : index
    %c0_41 = arith.constant 0 : index
    %70 = vector.load %arg11[%c0_40, %c0_41] : memref<8x32xf32, #tpu.memory_space<vmem>>, vector<8x32xf32>
    %71 = arith.mulf %61, %70 : vector<8x32xf32>
    %72 = arith.mulf %55, %63 : vector<8x32xf32>
    %73 = arith.addf %71, %72 : vector<8x32xf32>
    %74 = math.tanh %73 : vector<8x32xf32>
    %75 = arith.mulf %69, %74 : vector<8x32xf32>
    %c0_42 = arith.constant 0 : index
    %c0_43 = arith.constant 0 : index
    %76 = vector.load %arg11[%c0_42, %c0_43] : memref<8x32xf32, #tpu.memory_space<vmem>>, vector<8x32xf32>
    tpu.vector_store %arg11[%c0_42, %c0_43], %73 {strides = array<i32>} : memref<8x32xf32, #tpu.memory_space<vmem>>, vector<8x32xf32>,
    %c0_44 = arith.constant 0 : index
    %c0_45 = arith.constant 0 : index
    %77 = vector.load %arg10[%c0_44, %c0_45] : memref<8x32xf32, #tpu.memory_space<vmem>>, vector<8x32xf32>
    tpu.vector_store %arg10[%c0_44, %c0_45], %75 {strides = array<i32>} : memref<8x32xf32, #tpu.memory_space<vmem>>, vector<8x32xf32>,
    %c8_46 = arith.constant 8 : index
    %c0_47 = arith.constant 0 : index
    %78 = vector.load %arg9[%c8_46, %c0_47] : memref<64x32xf32, #tpu.memory_space<vmem>>, vector<8x32xf32>
    tpu.vector_store %arg9[%c8_46, %c0_47], %75 {strides = array<i32>} : memref<64x32xf32, #tpu.memory_space<vmem>>, vector<8x32xf32>,
    %c16 = arith.constant 16 : index
    %c0_48 = arith.constant 0 : index
    %79 = vector.load %arg8[%c16, %c0_48] : memref<64x128xf32, #tpu.memory_space<vmem>>, vector<8x128xf32>
    %c0_49 = arith.constant 0 : index
    %c0_50 = arith.constant 0 : index
    %80 = vector.load %arg10[%c0_49, %c0_50] : memref<8x32xf32, #tpu.memory_space<vmem>>, vector<8x32xf32>
    %c0_51 = arith.constant 0 : index
    %c0_52 = arith.constant 0 : index
    %81 = vector.load %arg2[%c0_51, %c0_52] : memref<32x128xf32, #tpu.memory_space<vmem>>, vector<32x128xf32>
    %cst_53 = arith.constant dense<0.000000e+00> : vector<8x128xf32>
    %82 = tpu.matmul %80, %81, %cst_53 {dimension_numbers = #tpu.dot_dimension_numbers<[1], [0], [0], [1], [0, 0, 1, 1], [], []>} : vector<8x32xf32>, vector<32x128xf32>, vector<8x128xf32> -> vector<8x128xf32>
    %83 = arith.addf %79, %82 : vector<8x128xf32>
    %84 = vector.extract_strided_slice %83 {offsets = [0, 0], sizes = [8, 32], strides = [1, 1]} : vector<8x128xf32> to vector<8x32xf32>
    %85 = arith.negf %84 : vector<8x32xf32>
    %86 = math.exp %85 : vector<8x32xf32>
    %cst_54 = arith.constant 1.000000e+00 : f32
    %87 = vector.broadcast %cst_54 : f32 to vector<8x32xf32>
    %88 = arith.addf %87, %86 : vector<8x32xf32>
    %89 = arith.divf %87, %88 : vector<8x32xf32>
    %90 = vector.extract_strided_slice %83 {offsets = [0, 32], sizes = [8, 32], strides = [1, 1]} : vector<8x128xf32> to vector<8x32xf32>
    %91 = arith.negf %90 : vector<8x32xf32>
    %92 = math.exp %91 : vector<8x32xf32>
    %cst_55 = arith.constant 1.000000e+00 : f32
    %93 = vector.broadcast %cst_55 : f32 to vector<8x32xf32>
    %94 = arith.addf %93, %92 : vector<8x32xf32>
    %95 = arith.divf %93, %94 : vector<8x32xf32>
    %96 = vector.extract_strided_slice %83 {offsets = [0, 64], sizes = [8, 32], strides = [1, 1]} : vector<8x128xf32> to vector<8x32xf32>
    %97 = math.tanh %96 : vector<8x32xf32>
    %98 = vector.extract_strided_slice %83 {offsets = [0, 96], sizes = [8, 32], strides = [1, 1]} : vector<8x128xf32> to vector<8x32xf32>
    %99 = arith.negf %98 : vector<8x32xf32>
    %100 = math.exp %99 : vector<8x32xf32>
    %cst_56 = arith.constant 1.000000e+00 : f32
    %101 = vector.broadcast %cst_56 : f32 to vector<8x32xf32>
    %102 = arith.addf %101, %100 : vector<8x32xf32>
    %103 = arith.divf %101, %102 : vector<8x32xf32>
    %c0_57 = arith.constant 0 : index
    %c0_58 = arith.constant 0 : index
    %104 = vector.load %arg11[%c0_57, %c0_58] : memref<8x32xf32, #tpu.memory_space<vmem>>, vector<8x32xf32>
    %105 = arith.mulf %95, %104 : vector<8x32xf32>
    %106 = arith.mulf %89, %97 : vector<8x32xf32>
    %107 = arith.addf %105, %106 : vector<8x32xf32>
    %108 = math.tanh %107 : vector<8x32xf32>
    %109 = arith.mulf %103, %108 : vector<8x32xf32>
    %c0_59 = arith.constant 0 : index
    %c0_60 = arith.constant 0 : index
    %110 = vector.load %arg11[%c0_59, %c0_60] : memref<8x32xf32, #tpu.memory_space<vmem>>, vector<8x32xf32>
    tpu.vector_store %arg11[%c0_59, %c0_60], %107 {strides = array<i32>} : memref<8x32xf32, #tpu.memory_space<vmem>>, vector<8x32xf32>,
    %c0_61 = arith.constant 0 : index
    %c0_62 = arith.constant 0 : index
    %111 = vector.load %arg10[%c0_61, %c0_62] : memref<8x32xf32, #tpu.memory_space<vmem>>, vector<8x32xf32>
    tpu.vector_store %arg10[%c0_61, %c0_62], %109 {strides = array<i32>} : memref<8x32xf32, #tpu.memory_space<vmem>>, vector<8x32xf32>,
    %c16_63 = arith.constant 16 : index
    %c0_64 = arith.constant 0 : index
    %112 = vector.load %arg9[%c16_63, %c0_64] : memref<64x32xf32, #tpu.memory_space<vmem>>, vector<8x32xf32>
    tpu.vector_store %arg9[%c16_63, %c0_64], %109 {strides = array<i32>} : memref<64x32xf32, #tpu.memory_space<vmem>>, vector<8x32xf32>,
    %c24 = arith.constant 24 : index
    %c0_65 = arith.constant 0 : index
    %113 = vector.load %arg8[%c24, %c0_65] : memref<64x128xf32, #tpu.memory_space<vmem>>, vector<8x128xf32>
    %c0_66 = arith.constant 0 : index
    %c0_67 = arith.constant 0 : index
    %114 = vector.load %arg10[%c0_66, %c0_67] : memref<8x32xf32, #tpu.memory_space<vmem>>, vector<8x32xf32>
    %c0_68 = arith.constant 0 : index
    %c0_69 = arith.constant 0 : index
    %115 = vector.load %arg2[%c0_68, %c0_69] : memref<32x128xf32, #tpu.memory_space<vmem>>, vector<32x128xf32>
    %cst_70 = arith.constant dense<0.000000e+00> : vector<8x128xf32>
    %116 = tpu.matmul %114, %115, %cst_70 {dimension_numbers = #tpu.dot_dimension_numbers<[1], [0], [0], [1], [0, 0, 1, 1], [], []>} : vector<8x32xf32>, vector<32x128xf32>, vector<8x128xf32> -> vector<8x128xf32>
    %117 = arith.addf %113, %116 : vector<8x128xf32>
    %118 = vector.extract_strided_slice %117 {offsets = [0, 0], sizes = [8, 32], strides = [1, 1]} : vector<8x128xf32> to vector<8x32xf32>
    %119 = arith.negf %118 : vector<8x32xf32>
    %120 = math.exp %119 : vector<8x32xf32>
    %cst_71 = arith.constant 1.000000e+00 : f32
    %121 = vector.broadcast %cst_71 : f32 to vector<8x32xf32>
    %122 = arith.addf %121, %120 : vector<8x32xf32>
    %123 = arith.divf %121, %122 : vector<8x32xf32>
    %124 = vector.extract_strided_slice %117 {offsets = [0, 32], sizes = [8, 32], strides = [1, 1]} : vector<8x128xf32> to vector<8x32xf32>
    %125 = arith.negf %124 : vector<8x32xf32>
    %126 = math.exp %125 : vector<8x32xf32>
    %cst_72 = arith.constant 1.000000e+00 : f32
    %127 = vector.broadcast %cst_72 : f32 to vector<8x32xf32>
    %128 = arith.addf %127, %126 : vector<8x32xf32>
    %129 = arith.divf %127, %128 : vector<8x32xf32>
    %130 = vector.extract_strided_slice %117 {offsets = [0, 64], sizes = [8, 32], strides = [1, 1]} : vector<8x128xf32> to vector<8x32xf32>
    %131 = math.tanh %130 : vector<8x32xf32>
    %132 = vector.extract_strided_slice %117 {offsets = [0, 96], sizes = [8, 32], strides = [1, 1]} : vector<8x128xf32> to vector<8x32xf32>
    %133 = arith.negf %132 : vector<8x32xf32>
    %134 = math.exp %133 : vector<8x32xf32>
    %cst_73 = arith.constant 1.000000e+00 : f32
    %135 = vector.broadcast %cst_73 : f32 to vector<8x32xf32>
    %136 = arith.addf %135, %134 : vector<8x32xf32>
    %137 = arith.divf %135, %136 : vector<8x32xf32>
    %c0_74 = arith.constant 0 : index
    %c0_75 = arith.constant 0 : index
    %138 = vector.load %arg11[%c0_74, %c0_75] : memref<8x32xf32, #tpu.memory_space<vmem>>, vector<8x32xf32>
    %139 = arith.mulf %129, %138 : vector<8x32xf32>
    %140 = arith.mulf %123, %131 : vector<8x32xf32>
    %141 = arith.addf %139, %140 : vector<8x32xf32>
    %142 = math.tanh %141 : vector<8x32xf32>
    %143 = arith.mulf %137, %142 : vector<8x32xf32>
    %c0_76 = arith.constant 0 : index
    %c0_77 = arith.constant 0 : index
    %144 = vector.load %arg11[%c0_76, %c0_77] : memref<8x32xf32, #tpu.memory_space<vmem>>, vector<8x32xf32>
    tpu.vector_store %arg11[%c0_76, %c0_77], %141 {strides = array<i32>} : memref<8x32xf32, #tpu.memory_space<vmem>>, vector<8x32xf32>,
    %c0_78 = arith.constant 0 : index
    %c0_79 = arith.constant 0 : index
    %145 = vector.load %arg10[%c0_78, %c0_79] : memref<8x32xf32, #tpu.memory_space<vmem>>, vector<8x32xf32>
    tpu.vector_store %arg10[%c0_78, %c0_79], %143 {strides = array<i32>} : memref<8x32xf32, #tpu.memory_space<vmem>>, vector<8x32xf32>,
    %c24_80 = arith.constant 24 : index
    %c0_81 = arith.constant 0 : index
    %146 = vector.load %arg9[%c24_80, %c0_81] : memref<64x32xf32, #tpu.memory_space<vmem>>, vector<8x32xf32>
    tpu.vector_store %arg9[%c24_80, %c0_81], %143 {strides = array<i32>} : memref<64x32xf32, #tpu.memory_space<vmem>>, vector<8x32xf32>,
    %c32 = arith.constant 32 : index
    %c0_82 = arith.constant 0 : index
    %147 = vector.load %arg8[%c32, %c0_82] : memref<64x128xf32, #tpu.memory_space<vmem>>, vector<8x128xf32>
    %c0_83 = arith.constant 0 : index
    %c0_84 = arith.constant 0 : index
    %148 = vector.load %arg10[%c0_83, %c0_84] : memref<8x32xf32, #tpu.memory_space<vmem>>, vector<8x32xf32>
    %c0_85 = arith.constant 0 : index
    %c0_86 = arith.constant 0 : index
    %149 = vector.load %arg2[%c0_85, %c0_86] : memref<32x128xf32, #tpu.memory_space<vmem>>, vector<32x128xf32>
    %cst_87 = arith.constant dense<0.000000e+00> : vector<8x128xf32>
    %150 = tpu.matmul %148, %149, %cst_87 {dimension_numbers = #tpu.dot_dimension_numbers<[1], [0], [0], [1], [0, 0, 1, 1], [], []>} : vector<8x32xf32>, vector<32x128xf32>, vector<8x128xf32> -> vector<8x128xf32>
    %151 = arith.addf %147, %150 : vector<8x128xf32>
    %152 = vector.extract_strided_slice %151 {offsets = [0, 0], sizes = [8, 32], strides = [1, 1]} : vector<8x128xf32> to vector<8x32xf32>
    %153 = arith.negf %152 : vector<8x32xf32>
    %154 = math.exp %153 : vector<8x32xf32>
    %cst_88 = arith.constant 1.000000e+00 : f32
    %155 = vector.broadcast %cst_88 : f32 to vector<8x32xf32>
    %156 = arith.addf %155, %154 : vector<8x32xf32>
    %157 = arith.divf %155, %156 : vector<8x32xf32>
    %158 = vector.extract_strided_slice %151 {offsets = [0, 32], sizes = [8, 32], strides = [1, 1]} : vector<8x128xf32> to vector<8x32xf32>
    %159 = arith.negf %158 : vector<8x32xf32>
    %160 = math.exp %159 : vector<8x32xf32>
    %cst_89 = arith.constant 1.000000e+00 : f32
    %161 = vector.broadcast %cst_89 : f32 to vector<8x32xf32>
    %162 = arith.addf %161, %160 : vector<8x32xf32>
    %163 = arith.divf %161, %162 : vector<8x32xf32>
    %164 = vector.extract_strided_slice %151 {offsets = [0, 64], sizes = [8, 32], strides = [1, 1]} : vector<8x128xf32> to vector<8x32xf32>
    %165 = math.tanh %164 : vector<8x32xf32>
    %166 = vector.extract_strided_slice %151 {offsets = [0, 96], sizes = [8, 32], strides = [1, 1]} : vector<8x128xf32> to vector<8x32xf32>
    %167 = arith.negf %166 : vector<8x32xf32>
    %168 = math.exp %167 : vector<8x32xf32>
    %cst_90 = arith.constant 1.000000e+00 : f32
    %169 = vector.broadcast %cst_90 : f32 to vector<8x32xf32>
    %170 = arith.addf %169, %168 : vector<8x32xf32>
    %171 = arith.divf %169, %170 : vector<8x32xf32>
    %c0_91 = arith.constant 0 : index
    %c0_92 = arith.constant 0 : index
    %172 = vector.load %arg11[%c0_91, %c0_92] : memref<8x32xf32, #tpu.memory_space<vmem>>, vector<8x32xf32>
    %173 = arith.mulf %163, %172 : vector<8x32xf32>
    %174 = arith.mulf %157, %165 : vector<8x32xf32>
    %175 = arith.addf %173, %174 : vector<8x32xf32>
    %176 = math.tanh %175 : vector<8x32xf32>
    %177 = arith.mulf %171, %176 : vector<8x32xf32>
    %c0_93 = arith.constant 0 : index
    %c0_94 = arith.constant 0 : index
    %178 = vector.load %arg11[%c0_93, %c0_94] : memref<8x32xf32, #tpu.memory_space<vmem>>, vector<8x32xf32>
    tpu.vector_store %arg11[%c0_93, %c0_94], %175 {strides = array<i32>} : memref<8x32xf32, #tpu.memory_space<vmem>>, vector<8x32xf32>,
    %c0_95 = arith.constant 0 : index
    %c0_96 = arith.constant 0 : index
    %179 = vector.load %arg10[%c0_95, %c0_96] : memref<8x32xf32, #tpu.memory_space<vmem>>, vector<8x32xf32>
    tpu.vector_store %arg10[%c0_95, %c0_96], %177 {strides = array<i32>} : memref<8x32xf32, #tpu.memory_space<vmem>>, vector<8x32xf32>,
    %c32_97 = arith.constant 32 : index
    %c0_98 = arith.constant 0 : index
    %180 = vector.load %arg9[%c32_97, %c0_98] : memref<64x32xf32, #tpu.memory_space<vmem>>, vector<8x32xf32>
    tpu.vector_store %arg9[%c32_97, %c0_98], %177 {strides = array<i32>} : memref<64x32xf32, #tpu.memory_space<vmem>>, vector<8x32xf32>,
    %c40 = arith.constant 40 : index
    %c0_99 = arith.constant 0 : index
    %181 = vector.load %arg8[%c40, %c0_99] : memref<64x128xf32, #tpu.memory_space<vmem>>, vector<8x128xf32>
    %c0_100 = arith.constant 0 : index
    %c0_101 = arith.constant 0 : index
    %182 = vector.load %arg10[%c0_100, %c0_101] : memref<8x32xf32, #tpu.memory_space<vmem>>, vector<8x32xf32>
    %c0_102 = arith.constant 0 : index
    %c0_103 = arith.constant 0 : index
    %183 = vector.load %arg2[%c0_102, %c0_103] : memref<32x128xf32, #tpu.memory_space<vmem>>, vector<32x128xf32>
    %cst_104 = arith.constant dense<0.000000e+00> : vector<8x128xf32>
    %184 = tpu.matmul %182, %183, %cst_104 {dimension_numbers = #tpu.dot_dimension_numbers<[1], [0], [0], [1], [0, 0, 1, 1], [], []>} : vector<8x32xf32>, vector<32x128xf32>, vector<8x128xf32> -> vector<8x128xf32>
    %185 = arith.addf %181, %184 : vector<8x128xf32>
    %186 = vector.extract_strided_slice %185 {offsets = [0, 0], sizes = [8, 32], strides = [1, 1]} : vector<8x128xf32> to vector<8x32xf32>
    %187 = arith.negf %186 : vector<8x32xf32>
    %188 = math.exp %187 : vector<8x32xf32>
    %cst_105 = arith.constant 1.000000e+00 : f32
    %189 = vector.broadcast %cst_105 : f32 to vector<8x32xf32>
    %190 = arith.addf %189, %188 : vector<8x32xf32>
    %191 = arith.divf %189, %190 : vector<8x32xf32>
    %192 = vector.extract_strided_slice %185 {offsets = [0, 32], sizes = [8, 32], strides = [1, 1]} : vector<8x128xf32> to vector<8x32xf32>
    %193 = arith.negf %192 : vector<8x32xf32>
    %194 = math.exp %193 : vector<8x32xf32>
    %cst_106 = arith.constant 1.000000e+00 : f32
    %195 = vector.broadcast %cst_106 : f32 to vector<8x32xf32>
    %196 = arith.addf %195, %194 : vector<8x32xf32>
    %197 = arith.divf %195, %196 : vector<8x32xf32>
    %198 = vector.extract_strided_slice %185 {offsets = [0, 64], sizes = [8, 32], strides = [1, 1]} : vector<8x128xf32> to vector<8x32xf32>
    %199 = math.tanh %198 : vector<8x32xf32>
    %200 = vector.extract_strided_slice %185 {offsets = [0, 96], sizes = [8, 32], strides = [1, 1]} : vector<8x128xf32> to vector<8x32xf32>
    %201 = arith.negf %200 : vector<8x32xf32>
    %202 = math.exp %201 : vector<8x32xf32>
    %cst_107 = arith.constant 1.000000e+00 : f32
    %203 = vector.broadcast %cst_107 : f32 to vector<8x32xf32>
    %204 = arith.addf %203, %202 : vector<8x32xf32>
    %205 = arith.divf %203, %204 : vector<8x32xf32>
    %c0_108 = arith.constant 0 : index
    %c0_109 = arith.constant 0 : index
    %206 = vector.load %arg11[%c0_108, %c0_109] : memref<8x32xf32, #tpu.memory_space<vmem>>, vector<8x32xf32>
    %207 = arith.mulf %197, %206 : vector<8x32xf32>
    %208 = arith.mulf %191, %199 : vector<8x32xf32>
    %209 = arith.addf %207, %208 : vector<8x32xf32>
    %210 = math.tanh %209 : vector<8x32xf32>
    %211 = arith.mulf %205, %210 : vector<8x32xf32>
    %c0_110 = arith.constant 0 : index
    %c0_111 = arith.constant 0 : index
    %212 = vector.load %arg11[%c0_110, %c0_111] : memref<8x32xf32, #tpu.memory_space<vmem>>, vector<8x32xf32>
    tpu.vector_store %arg11[%c0_110, %c0_111], %209 {strides = array<i32>} : memref<8x32xf32, #tpu.memory_space<vmem>>, vector<8x32xf32>,
    %c0_112 = arith.constant 0 : index
    %c0_113 = arith.constant 0 : index
    %213 = vector.load %arg10[%c0_112, %c0_113] : memref<8x32xf32, #tpu.memory_space<vmem>>, vector<8x32xf32>
    tpu.vector_store %arg10[%c0_112, %c0_113], %211 {strides = array<i32>} : memref<8x32xf32, #tpu.memory_space<vmem>>, vector<8x32xf32>,
    %c40_114 = arith.constant 40 : index
    %c0_115 = arith.constant 0 : index
    %214 = vector.load %arg9[%c40_114, %c0_115] : memref<64x32xf32, #tpu.memory_space<vmem>>, vector<8x32xf32>
    tpu.vector_store %arg9[%c40_114, %c0_115], %211 {strides = array<i32>} : memref<64x32xf32, #tpu.memory_space<vmem>>, vector<8x32xf32>,
    %c48 = arith.constant 48 : index
    %c0_116 = arith.constant 0 : index
    %215 = vector.load %arg8[%c48, %c0_116] : memref<64x128xf32, #tpu.memory_space<vmem>>, vector<8x128xf32>
    %c0_117 = arith.constant 0 : index
    %c0_118 = arith.constant 0 : index
    %216 = vector.load %arg10[%c0_117, %c0_118] : memref<8x32xf32, #tpu.memory_space<vmem>>, vector<8x32xf32>
    %c0_119 = arith.constant 0 : index
    %c0_120 = arith.constant 0 : index
    %217 = vector.load %arg2[%c0_119, %c0_120] : memref<32x128xf32, #tpu.memory_space<vmem>>, vector<32x128xf32>
    %cst_121 = arith.constant dense<0.000000e+00> : vector<8x128xf32>
    %218 = tpu.matmul %216, %217, %cst_121 {dimension_numbers = #tpu.dot_dimension_numbers<[1], [0], [0], [1], [0, 0, 1, 1], [], []>} : vector<8x32xf32>, vector<32x128xf32>, vector<8x128xf32> -> vector<8x128xf32>
    %219 = arith.addf %215, %218 : vector<8x128xf32>
    %220 = vector.extract_strided_slice %219 {offsets = [0, 0], sizes = [8, 32], strides = [1, 1]} : vector<8x128xf32> to vector<8x32xf32>
    %221 = arith.negf %220 : vector<8x32xf32>
    %222 = math.exp %221 : vector<8x32xf32>
    %cst_122 = arith.constant 1.000000e+00 : f32
    %223 = vector.broadcast %cst_122 : f32 to vector<8x32xf32>
    %224 = arith.addf %223, %222 : vector<8x32xf32>
    %225 = arith.divf %223, %224 : vector<8x32xf32>
    %226 = vector.extract_strided_slice %219 {offsets = [0, 32], sizes = [8, 32], strides = [1, 1]} : vector<8x128xf32> to vector<8x32xf32>
    %227 = arith.negf %226 : vector<8x32xf32>
    %228 = math.exp %227 : vector<8x32xf32>
    %cst_123 = arith.constant 1.000000e+00 : f32
    %229 = vector.broadcast %cst_123 : f32 to vector<8x32xf32>
    %230 = arith.addf %229, %228 : vector<8x32xf32>
    %231 = arith.divf %229, %230 : vector<8x32xf32>
    %232 = vector.extract_strided_slice %219 {offsets = [0, 64], sizes = [8, 32], strides = [1, 1]} : vector<8x128xf32> to vector<8x32xf32>
    %233 = math.tanh %232 : vector<8x32xf32>
    %234 = vector.extract_strided_slice %219 {offsets = [0, 96], sizes = [8, 32], strides = [1, 1]} : vector<8x128xf32> to vector<8x32xf32>
    %235 = arith.negf %234 : vector<8x32xf32>
    %236 = math.exp %235 : vector<8x32xf32>
    %cst_124 = arith.constant 1.000000e+00 : f32
    %237 = vector.broadcast %cst_124 : f32 to vector<8x32xf32>
    %238 = arith.addf %237, %236 : vector<8x32xf32>
    %239 = arith.divf %237, %238 : vector<8x32xf32>
    %c0_125 = arith.constant 0 : index
    %c0_126 = arith.constant 0 : index
    %240 = vector.load %arg11[%c0_125, %c0_126] : memref<8x32xf32, #tpu.memory_space<vmem>>, vector<8x32xf32>
    %241 = arith.mulf %231, %240 : vector<8x32xf32>
    %242 = arith.mulf %225, %233 : vector<8x32xf32>
    %243 = arith.addf %241, %242 : vector<8x32xf32>
    %244 = math.tanh %243 : vector<8x32xf32>
    %245 = arith.mulf %239, %244 : vector<8x32xf32>
    %c0_127 = arith.constant 0 : index
    %c0_128 = arith.constant 0 : index
    %246 = vector.load %arg11[%c0_127, %c0_128] : memref<8x32xf32, #tpu.memory_space<vmem>>, vector<8x32xf32>
    tpu.vector_store %arg11[%c0_127, %c0_128], %243 {strides = array<i32>} : memref<8x32xf32, #tpu.memory_space<vmem>>, vector<8x32xf32>,
    %c0_129 = arith.constant 0 : index
    %c0_130 = arith.constant 0 : index
    %247 = vector.load %arg10[%c0_129, %c0_130] : memref<8x32xf32, #tpu.memory_space<vmem>>, vector<8x32xf32>
    tpu.vector_store %arg10[%c0_129, %c0_130], %245 {strides = array<i32>} : memref<8x32xf32, #tpu.memory_space<vmem>>, vector<8x32xf32>,
    %c48_131 = arith.constant 48 : index
    %c0_132 = arith.constant 0 : index
    %248 = vector.load %arg9[%c48_131, %c0_132] : memref<64x32xf32, #tpu.memory_space<vmem>>, vector<8x32xf32>
    tpu.vector_store %arg9[%c48_131, %c0_132], %245 {strides = array<i32>} : memref<64x32xf32, #tpu.memory_space<vmem>>, vector<8x32xf32>,
    %c56 = arith.constant 56 : index
    %c0_133 = arith.constant 0 : index
    %249 = vector.load %arg8[%c56, %c0_133] : memref<64x128xf32, #tpu.memory_space<vmem>>, vector<8x128xf32>
    %c0_134 = arith.constant 0 : index
    %c0_135 = arith.constant 0 : index
    %250 = vector.load %arg10[%c0_134, %c0_135] : memref<8x32xf32, #tpu.memory_space<vmem>>, vector<8x32xf32>
    %c0_136 = arith.constant 0 : index
    %c0_137 = arith.constant 0 : index
    %251 = vector.load %arg2[%c0_136, %c0_137] : memref<32x128xf32, #tpu.memory_space<vmem>>, vector<32x128xf32>
    %cst_138 = arith.constant dense<0.000000e+00> : vector<8x128xf32>
    %252 = tpu.matmul %250, %251, %cst_138 {dimension_numbers = #tpu.dot_dimension_numbers<[1], [0], [0], [1], [0, 0, 1, 1], [], []>} : vector<8x32xf32>, vector<32x128xf32>, vector<8x128xf32> -> vector<8x128xf32>
    %253 = arith.addf %249, %252 : vector<8x128xf32>
    %254 = vector.extract_strided_slice %253 {offsets = [0, 0], sizes = [8, 32], strides = [1, 1]} : vector<8x128xf32> to vector<8x32xf32>
    %255 = arith.negf %254 : vector<8x32xf32>
    %256 = math.exp %255 : vector<8x32xf32>
    %cst_139 = arith.constant 1.000000e+00 : f32
    %257 = vector.broadcast %cst_139 : f32 to vector<8x32xf32>
    %258 = arith.addf %257, %256 : vector<8x32xf32>
    %259 = arith.divf %257, %258 : vector<8x32xf32>
    %260 = vector.extract_strided_slice %253 {offsets = [0, 32], sizes = [8, 32], strides = [1, 1]} : vector<8x128xf32> to vector<8x32xf32>
    %261 = arith.negf %260 : vector<8x32xf32>
    %262 = math.exp %261 : vector<8x32xf32>
    %cst_140 = arith.constant 1.000000e+00 : f32
    %263 = vector.broadcast %cst_140 : f32 to vector<8x32xf32>
    %264 = arith.addf %263, %262 : vector<8x32xf32>
    %265 = arith.divf %263, %264 : vector<8x32xf32>
    %266 = vector.extract_strided_slice %253 {offsets = [0, 64], sizes = [8, 32], strides = [1, 1]} : vector<8x128xf32> to vector<8x32xf32>
    %267 = math.tanh %266 : vector<8x32xf32>
    %268 = vector.extract_strided_slice %253 {offsets = [0, 96], sizes = [8, 32], strides = [1, 1]} : vector<8x128xf32> to vector<8x32xf32>
    %269 = arith.negf %268 : vector<8x32xf32>
    %270 = math.exp %269 : vector<8x32xf32>
    %cst_141 = arith.constant 1.000000e+00 : f32
    %271 = vector.broadcast %cst_141 : f32 to vector<8x32xf32>
    %272 = arith.addf %271, %270 : vector<8x32xf32>
    %273 = arith.divf %271, %272 : vector<8x32xf32>
    %c0_142 = arith.constant 0 : index
    %c0_143 = arith.constant 0 : index
    %274 = vector.load %arg11[%c0_142, %c0_143] : memref<8x32xf32, #tpu.memory_space<vmem>>, vector<8x32xf32>
    %275 = arith.mulf %265, %274 : vector<8x32xf32>
    %276 = arith.mulf %259, %267 : vector<8x32xf32>
    %277 = arith.addf %275, %276 : vector<8x32xf32>
    %278 = math.tanh %277 : vector<8x32xf32>
    %279 = arith.mulf %273, %278 : vector<8x32xf32>
    %c0_144 = arith.constant 0 : index
    %c0_145 = arith.constant 0 : index
    %280 = vector.load %arg11[%c0_144, %c0_145] : memref<8x32xf32, #tpu.memory_space<vmem>>, vector<8x32xf32>
    tpu.vector_store %arg11[%c0_144, %c0_145], %277 {strides = array<i32>} : memref<8x32xf32, #tpu.memory_space<vmem>>, vector<8x32xf32>,
    %c0_146 = arith.constant 0 : index
    %c0_147 = arith.constant 0 : index
    %281 = vector.load %arg10[%c0_146, %c0_147] : memref<8x32xf32, #tpu.memory_space<vmem>>, vector<8x32xf32>
    tpu.vector_store %arg10[%c0_146, %c0_147], %279 {strides = array<i32>} : memref<8x32xf32, #tpu.memory_space<vmem>>, vector<8x32xf32>,
    %c56_148 = arith.constant 56 : index
    %c0_149 = arith.constant 0 : index
    %282 = vector.load %arg9[%c56_148, %c0_149] : memref<64x32xf32, #tpu.memory_space<vmem>>, vector<8x32xf32>
    tpu.vector_store %arg9[%c56_148, %c0_149], %279 {strides = array<i32>} : memref<64x32xf32, #tpu.memory_space<vmem>>, vector<8x32xf32>,
    %c0_150 = arith.constant 0 : index
    %c0_151 = arith.constant 0 : index
    %283 = vector.load %arg9[%c0_150, %c0_151] : memref<64x32xf32, #tpu.memory_space<vmem>>, vector<64x32xf32>
    %c0_152 = arith.constant 0 : index
    %c0_153 = arith.constant 0 : index
    %284 = vector.load %arg4[%c0_152, %c0_153] : memref<64x32xf32, #tpu.memory_space<vmem>>, vector<64x32xf32>
    %285 = arith.mulf %283, %284 : vector<64x32xf32>
    %cst_154 = arith.constant 0.000000e+00 : f32
    %286 = vector.broadcast %cst_154 : f32 to vector<64x32xf32>
    %287 = arith.maximumf %285, %286 : vector<64x32xf32>
    %c0_155 = arith.constant 0 : index
    %c0_156 = arith.constant 0 : index
    %288 = vector.load %arg5[%c0_155, %c0_156] : memref<32x128xf32, #tpu.memory_space<vmem>>, vector<32x128xf32>
    %cst_157 = arith.constant dense<0.000000e+00> : vector<64x128xf32>
    %289 = tpu.matmul %287, %288, %cst_157 {dimension_numbers = #tpu.dot_dimension_numbers<[1], [0], [0], [1], [0, 0, 1, 1], [], []>} : vector<64x32xf32>, vector<32x128xf32>, vector<64x128xf32> -> vector<64x128xf32>
    %c0_158 = arith.constant 0 : index
    %c0_159 = arith.constant 0 : index
    %290 = vector.load %arg6[%c0_158, %c0_159] : memref<1x128xf32, #tpu.memory_space<vmem>>, vector<1x128xf32>
    %291 = vector.broadcast %290 : vector<1x128xf32> to vector<64x128xf32>
    %292 = arith.addf %289, %291 : vector<64x128xf32>
    %c0_160 = arith.constant 0 : index
    %c0_161 = arith.constant 0 : index
    %293 = vector.load %arg7[%c0_160, %c0_161] : memref<64x128xf32, #tpu.memory_space<vmem>>, vector<64x128xf32>
    tpu.vector_store %arg7[%c0_160, %c0_161], %292 {strides = array<i32>} : memref<64x128xf32, #tpu.memory_space<vmem>>, vector<64x128xf32>,
    return
  }
}

</mosaic_0001>

<llo_original>
// kernel: tpu_custom_call.1
$region0: #{tpu_custom_call.1}
  #allocation0 [shape = 'u32[]', space=smem, size = 0x4, offset = 0x4, fixed_abs, tag = 'smem constant byte address 0x4 - core index']
  #allocation1 [shape = 'u32[144,128]{1,0:T(1,128)}', space=vmem, size = 0x12000, scoped, tag = 'internal scratch']
  #allocation2 [shape = 'f32[64,128]{1,0:T(8,128)}', space=vmem, size = 0x8000, scoped, tag = 'scratch operand']
  #allocation3 [shape = 'f32[64,32]{1,0:T(8,128)}', space=vmem, size = 0x8000, scoped, tag = 'scratch operand']
  #allocation4 [shape = 'f32[8,32]{1,0:T(8,128)}', space=vmem, size = 0x1000, scoped, tag = 'scratch operand']
  #allocation5 [shape = 'f32[8,32]{1,0:T(8,128)}', space=vmem, size = 0x1000, scoped, tag = 'scratch operand']
  %s0 = inlined_call_operand.vmem [shape: f32[64,16], index: 0, kind: input, shape index: {}]
  %s1 = inlined_call_operand.vmem [shape: f32[16,128], index: 1, kind: input, shape index: {}]
  %s2 = inlined_call_operand.vmem [shape: f32[32,128], index: 2, kind: input, shape index: {}]
  %s3 = inlined_call_operand.vmem [shape: f32[1,128], index: 3, kind: input, shape index: {}]
  %s4 = inlined_call_operand.vmem [shape: f32[64,32], index: 4, kind: input, shape index: {}]
  %s5 = inlined_call_operand.vmem [shape: f32[32,128], index: 5, kind: input, shape index: {}]
  %s6 = inlined_call_operand.vmem [shape: f32[1,128], index: 6, kind: input, shape index: {}]
  %s7 = inlined_call_operand.hbm [shape: f32[64,128], index: 7, kind: output, shape index: {}]
  %s8 = sld [smem:[#allocation0]]
  $region38: #{tpu_custom_call.1} parent=0
    _
  %s10 = ssub.s32 1, %s8
  %s11 = scalar_select 0, %s10, %s8
  $region1: #{tpu_custom_call.1} parent=0
    #allocation6 [shape = 'u8[32768]{0}', space=vmem, size = 0x8000, scoped, tag = 'output window, operand 0, single buffered']
    #allocation7 [shape = 's32[1]{0}', space=sflag, size = 0x4, scoped, tag = 'scoped memory for tpu_custom_call.1']
    %12 = vsyncpa [#allocation7], 0
    // Predicated region
    $region2: #{tpu_custom_call.1} parent=1 // pred_check
      _
    $region3: #{tpu_custom_call.1} parent=1 // pred_check_branch
      %14 = sbr.rel (0) target = $region5
    $region4: #{tpu_custom_call.1} parent=1 // pred_region
      _
    $region5: #{tpu_custom_call.1} parent=1 // pred_fallthru
      _
    // Predicated region
    $region6: #{tpu_custom_call.1} parent=1 // pred_check
      _
    $region7: #{tpu_custom_call.1} parent=1 // pred_check_branch
      %16 = sbr.rel (0) target = $region9
    $region8: #{tpu_custom_call.1} parent=1 // pred_region
      _
    $region9: #{tpu_custom_call.1} parent=1 // pred_fallthru
      _
    // Predicated region
    $region10: #{tpu_custom_call.1} parent=1 // pred_check
      _
    $region11: #{tpu_custom_call.1} parent=1 // pred_check_branch
      %18 = sbr.rel (0) target = $region13
    $region12: #{tpu_custom_call.1} parent=1 // pred_region
      _
    $region13: #{tpu_custom_call.1} parent=1 // pred_fallthru
      _
    // Predicated region
    $region14: #{tpu_custom_call.1} parent=1 // pred_check
      _
    $region15: #{tpu_custom_call.1} parent=1 // pred_check_branch
      %20 = sbr.rel (0) target = $region17
    $region16: #{tpu_custom_call.1} parent=1 // pred_region
      _
    $region17: #{tpu_custom_call.1} parent=1 // pred_fallthru
      _
    // Predicated region
    $region18: #{tpu_custom_call.1} parent=1 // pred_check
      _
    $region19: #{tpu_custom_call.1} parent=1 // pred_check_branch
      %22 = sbr.rel (0) target = $region21
    $region20: #{tpu_custom_call.1} parent=1 // pred_region
      _
    $region21: #{tpu_custom_call.1} parent=1 // pred_fallthru
      _
    // Predicated region
    $region22: #{tpu_custom_call.1} parent=1 // pred_check
      _
    $region23: #{tpu_custom_call.1} parent=1 // pred_check_branch
      %24 = sbr.rel (0) target = $region25
    $region24: #{tpu_custom_call.1} parent=1 // pred_region
      _
    $region25: #{tpu_custom_call.1} parent=1 // pred_fallthru
      _
    // Predicated region
    $region26: #{tpu_custom_call.1} parent=1 // pred_check
      _
    $region27: #{tpu_custom_call.1} parent=1 // pred_check_branch
      %26 = sbr.rel (0) target = $region29
    $region28: #{tpu_custom_call.1} parent=1 // pred_region
      _
    $region29: #{tpu_custom_call.1} parent=1 // pred_fallthru
      _
    %v27 = vld [vmem:[%s0] sm:$0xff]
    %v28 = vld [vmem:[%s0 + $0x8] sm:$0xff]
    %v29 = vld [vmem:[%s0 + $0x10] sm:$0xff]
    %v30 = vld [vmem:[%s0 + $0x18] sm:$0xff]
    %v31 = vld [vmem:[%s0 + $0x20] sm:$0xff]
    %v32 = vld [vmem:[%s0 + $0x28] sm:$0xff]
    %v33 = vld [vmem:[%s0 + $0x30] sm:$0xff]
    %v34 = vld [vmem:[%s0 + $0x38] sm:$0xff]
    %v35 = vld [vmem:[%s1] sm:$0xff]
    %v36 = vld [vmem:[%s1 + $0x8] sm:$0xff]
    %v37 = vld [vmem:[%s3] sm:$0x1]
    %v39 = vlaneseq
    %v40 = vshrl.u32 %v39, 7
    %v41 = vsub.s32 0, %v40
    %v42 = vrot.slane %v37, %v41
    %vm44 = vcmask 130048
    %v46 = vsel %vm44, %v27, 0
    %v49 = vsel %vm44, %v28, 0
    %v52 = vsel %vm44, %v29, 0
    %v55 = vsel %vm44, %v30, 0
    %v58 = vsel %vm44, %v31, 0
    %v61 = vsel %vm44, %v32, 0
    %v64 = vsel %vm44, %v33, 0
    %v67 = vsel %vm44, %v34, 0
    %69 = vmatprep.subr.mxu0 0.0
    %70 = vmatpush1.msra.mxu0 %v35
    %71 = vmatprep.subr.mxu0 0.0
    %72 = vmatpush1.msra.mxu0 %v36
    %73 = vmatprep.subr.mxu0 0.0
    %74 = vmatpush1.msra.mxu0 0.0
    %75 = vmatprep.subr.mxu0 0.0
    %76 = vmatpush1.msra.mxu0 0.0
    %77 = vmatprep.subr.mxu0 0.0
    %78 = vmatpush1.msra.mxu0 0.0
    %79 = vmatprep.subr.mxu0 0.0
    %80 = vmatpush1.msra.mxu0 0.0
    %81 = vmatprep.subr.mxu0 0.0
    %82 = vmatpush1.msra.mxu0 0.0
    %83 = vmatprep.subr.mxu0 0.0
    %84 = vmatpush1.msra.mxu0 0.0
    %85 = vmatprep.subr.mxu0 0.0
    %86 = vmatpush1.msra.mxu0 0.0
    %87 = vmatprep.subr.mxu0 0.0
    %88 = vmatpush1.msra.mxu0 0.0
    %89 = vmatprep.subr.mxu0 0.0
    %90 = vmatpush1.msra.mxu0 0.0
    %91 = vmatprep.subr.mxu0 0.0
    %92 = vmatpush1.msra.mxu0 0.0
    %93 = vmatprep.subr.mxu0 0.0
    %94 = vmatpush1.msra.mxu0 0.0
    %95 = vmatprep.subr.mxu0 0.0
    %96 = vmatpush1.msra.mxu0 0.0
    %97 = vmatprep.subr.mxu0 0.0
    %98 = vmatpush1.msra.mxu0 0.0
    %99 = vmatprep.subr.mxu0 0.0
    %100 = vmatpush1.msra.mxu0 0.0
    %101 = vmatprep.subr.mxu0 0.0
    %102 = vmatpush1.msra.mxu0 0.0
    %103 = vmatprep.subr.mxu0 0.0
    %104 = vmatpush1.msra.mxu0 0.0
    %105 = vmatprep.subr.mxu0 0.0
    %106 = vmatpush1.msra.mxu0 0.0
    %107 = vmatprep.subr.mxu0 0.0
    %108 = vmatpush1.msra.mxu0 0.0
    %109 = vmatprep.subr.mxu0 0.0
    %110 = vmatpush1.msra.mxu0 0.0
    %111 = vmatprep.subr.mxu0 0.0
    %112 = vmatpush1.msra.mxu0 0.0
    %113 = vmatprep.subr.mxu0 0.0
    %114 = vmatpush1.msra.mxu0 0.0
    %115 = vmatprep.subr.mxu0 0.0
    %116 = vmatpush1.msra.mxu0 0.0
    %117 = vmatprep.subr.mxu0 0.0
    %118 = vmatpush1.msra.mxu0 0.0
    %119 = vmatprep.subr.mxu0 0.0
    %120 = vmatpush1.msra.mxu0 0.0
    %121 = vmatprep.subr.mxu0 0.0
    %122 = vmatpush1.msra.mxu0 0.0
    %123 = vmatprep.subr.mxu0 0.0
    %124 = vmatpush1.msra.mxu0 0.0
    %125 = vmatprep.subr.mxu0 0.0
    %126 = vmatpush1.msra.mxu0 0.0
    %127 = vmatprep.subr.mxu0 0.0
    %128 = vmatpush1.msra.mxu0 0.0
    %129 = vmatprep.subr.mxu0 0.0
    %130 = vmatpush1.msra.mxu0 0.0
    %131 = vmatprep.subr.mxu0 0.0
    %132 = vmatpush1.msra.mxu0 0.0
    %133 = vmatprep.mubr.f32.mxu0 0.0
    %134 = vmatmul.mubr.f32.gmra.mrb[0].mxu0 %v46
    %v135 = vpop.f32.mrb[0].mxu0
    %v136 = vadd.f32 %v42, %v135
    %v137 = vpop.f32.mrb[0].mxu0
    %138 = vmatprep.mubr.f32.mxu0 0.0
    %139 = vmatmul.mubr.f32.gmra.mrb[0].mxu0 %v49
    %v140 = vpop.f32.mrb[0].mxu0
    %v141 = vadd.f32 %v42, %v140
    %v142 = vpop.f32.mrb[0].mxu0
    %143 = vmatprep.mubr.f32.mxu0 0.0
    %144 = vmatmul.mubr.f32.gmra.mrb[0].mxu0 %v52
    %v145 = vpop.f32.mrb[0].mxu0
    %v146 = vadd.f32 %v42, %v145
    %v147 = vpop.f32.mrb[0].mxu0
    %148 = vmatprep.mubr.f32.mxu0 0.0
    %149 = vmatmul.mubr.f32.gmra.mrb[0].mxu0 %v55
    %v150 = vpop.f32.mrb[0].mxu0
    %v151 = vadd.f32 %v42, %v150
    %v152 = vpop.f32.mrb[0].mxu0
    %153 = vmatprep.mubr.f32.mxu0 0.0
    %154 = vmatmul.mubr.f32.gmra.mrb[0].mxu0 %v58
    %v155 = vpop.f32.mrb[0].mxu0
    %v156 = vadd.f32 %v42, %v155
    %v157 = vpop.f32.mrb[0].mxu0
    %158 = vmatprep.mubr.f32.mxu0 0.0
    %159 = vmatmul.mubr.f32.gmra.mrb[0].mxu0 %v61
    %v160 = vpop.f32.mrb[0].mxu0
    %v161 = vadd.f32 %v42, %v160
    %v162 = vpop.f32.mrb[0].mxu0
    %163 = vmatprep.mubr.f32.mxu0 0.0
    %164 = vmatmul.mubr.f32.gmra.mrb[0].mxu0 %v64
    %v165 = vpop.f32.mrb[0].mxu0
    %v166 = vadd.f32 %v42, %v165
    %v167 = vpop.f32.mrb[0].mxu0
    %168 = vmatprep.mubr.f32.mxu0 0.0
    %169 = vmatmul.mubr.f32.gmra.mrb[0].mxu0 %v67
    %v170 = vpop.f32.mrb[0].mxu0
    %v171 = vadd.f32 %v42, %v170
    %v172 = vpop.f32.mrb[0].mxu0
    %173 = vdwg.mxu0
    %174 = vst [vmem:[#allocation2] sm:$0xff] %v136
    %175 = vst [vmem:[#allocation2 + $0x8] sm:$0xff] %v141
    %176 = vst [vmem:[#allocation2 + $0x10] sm:$0xff] %v146
    %177 = vst [vmem:[#allocation2 + $0x18] sm:$0xff] %v151
    %178 = vst [vmem:[#allocation2 + $0x20] sm:$0xff] %v156
    %179 = vst [vmem:[#allocation2 + $0x28] sm:$0xff] %v161
    %180 = vst [vmem:[#allocation2 + $0x30] sm:$0xff] %v166
    %181 = vst [vmem:[#allocation2 + $0x38] sm:$0xff] %v171
    %vm182 = vcmask 261120
    %183 = vst.msk [vmem:[#allocation4] sm:$0xff] %vm182, 0.0
    %184 = vst.msk [vmem:[#allocation5] sm:$0xff] %vm182, 0.0
    %v185 = vld [vmem:[#allocation2] sm:$0xff]
    %v186 = vld [vmem:[#allocation4] sm:$0xff]
    %v187 = vld [vmem:[%s2] sm:$0xff]
    %v188 = vld [vmem:[%s2 + $0x8] sm:$0xff]
    %v189 = vld [vmem:[%s2 + $0x10] sm:$0xff]
    %v190 = vld [vmem:[%s2 + $0x18] sm:$0xff]
    %v192 = vsel %vm182, %v186, 0
    %194 = vmatprep.subr.mxu0 0.0
    %195 = vmatpush1.msra.mxu0 %v187
    %196 = vmatprep.subr.mxu0 0.0
    %197 = vmatpush1.msra.mxu0 %v188
    %198 = vmatprep.subr.mxu0 0.0
    %199 = vmatpush1.msra.mxu0 %v189
    %200 = vmatprep.subr.mxu0 0.0
    %201 = vmatpush1.msra.mxu0 %v190
    %202 = vmatprep.subr.mxu0 0.0
    %203 = vmatpush1.msra.mxu0 0.0
    %204 = vmatprep.subr.mxu0 0.0
    %205 = vmatpush1.msra.mxu0 0.0
    %206 = vmatprep.subr.mxu0 0.0
    %207 = vmatpush1.msra.mxu0 0.0
    %208 = vmatprep.subr.mxu0 0.0
    %209 = vmatpush1.msra.mxu0 0.0
    %210 = vmatprep.subr.mxu0 0.0
    %211 = vmatpush1.msra.mxu0 0.0
    %212 = vmatprep.subr.mxu0 0.0
    %213 = vmatpush1.msra.mxu0 0.0
    %214 = vmatprep.subr.mxu0 0.0
    %215 = vmatpush1.msra.mxu0 0.0
    %216 = vmatprep.subr.mxu0 0.0
    %217 = vmatpush1.msra.mxu0 0.0
    %218 = vmatprep.subr.mxu0 0.0
    %219 = vmatpush1.msra.mxu0 0.0
    %220 = vmatprep.subr.mxu0 0.0
    %221 = vmatpush1.msra.mxu0 0.0
    %222 = vmatprep.subr.mxu0 0.0
    %223 = vmatpush1.msra.mxu0 0.0
    %224 = vmatprep.subr.mxu0 0.0
    %225 = vmatpush1.msra.mxu0 0.0
    %226 = vmatprep.subr.mxu0 0.0
    %227 = vmatpush1.msra.mxu0 0.0
    %228 = vmatprep.subr.mxu0 0.0
    %229 = vmatpush1.msra.mxu0 0.0
    %230 = vmatprep.subr.mxu0 0.0
    %231 = vmatpush1.msra.mxu0 0.0
    %232 = vmatprep.subr.mxu0 0.0
    %233 = vmatpush1.msra.mxu0 0.0
    %234 = vmatprep.subr.mxu0 0.0
    %235 = vmatpush1.msra.mxu0 0.0
    %236 = vmatprep.subr.mxu0 0.0
    %237 = vmatpush1.msra.mxu0 0.0
    %238 = vmatprep.subr.mxu0 0.0
    %239 = vmatpush1.msra.mxu0 0.0
    %240 = vmatprep.subr.mxu0 0.0
    %241 = vmatpush1.msra.mxu0 0.0
    %242 = vmatprep.subr.mxu0 0.0
    %243 = vmatpush1.msra.mxu0 0.0
    %244 = vmatprep.subr.mxu0 0.0
    %245 = vmatpush1.msra.mxu0 0.0
    %246 = vmatprep.subr.mxu0 0.0
    %247 = vmatpush1.msra.mxu0 0.0
    %248 = vmatprep.subr.mxu0 0.0
    %249 = vmatpush1.msra.mxu0 0.0
    %250 = vmatprep.subr.mxu0 0.0
    %251 = vmatpush1.msra.mxu0 0.0
    %252 = vmatprep.subr.mxu0 0.0
    %253 = vmatpush1.msra.mxu0 0.0
    %254 = vmatprep.subr.mxu0 0.0
    %255 = vmatpush1.msra.mxu0 0.0
    %256 = vmatprep.subr.mxu0 0.0
    %257 = vmatpush1.msra.mxu0 0.0
    %258 = vmatprep.mubr.f32.mxu0 0.0
    %259 = vmatmul.mubr.f32.gmra.mrb[0].mxu0 %v192
    %v260 = vpop.f32.mrb[0].mxu0
    %v261 = vadd.f32 0.0, %v260
    %v262 = vpop.f32.mrb[0].mxu0
    %263 = vdwg.mxu0
    %v264 = vadd.f32 %v185, %v261
    %v265 = vxor.u32 %v264, 2147483648
    %v266 = vmul.f32 %v265, 1.442695
    %v267 = vpow.pop %v266
    %v268 = vadd.f32 %v267, 1.0
    %v269 = vrcp.pop %v268
    %v270 = vmul.f32 1.0, %v269
    %v271 = vtanh.pop %v264
    %v272 = vld [vmem:[#allocation5] sm:$0xff]
    %274 = vrot.lane.b32.xlu0 %v272, 32
    %v275 = vpop.permute.xlu0 %274
    %v277 = vmul.f32 %v270, %v275
    %279 = vrot.lane.b32.xlu0 %v271, 64
    %v280 = vpop.permute.xlu0 %279
    %v282 = vmul.f32 %v270, %v280
    %284 = vrot.lane.b32.xlu0 %v282, 32
    %v285 = vpop.permute.xlu0 %284
    %v287 = vadd.f32 %v277, %v285
    %v288 = vtanh.pop %v287
    %290 = vrot.lane.b32.xlu0 %v288, 64
    %v291 = vpop.permute.xlu0 %290
    %v293 = vmul.f32 %v270, %v291
    %295 = vrot.lane.b32.xlu0 %v287, 96
    %v296 = vpop.permute.xlu0 %295
    %298 = vst.msk [vmem:[#allocation5] sm:$0xff] %vm182, %v296
    %300 = vrot.lane.b32.xlu0 %v293, 32
    %v301 = vpop.permute.xlu0 %300
    %303 = vst.msk [vmem:[#allocation4] sm:$0xff] %vm182, %v301
    %304 = vst.msk [vmem:[#allocation3] sm:$0xff] %vm182, %v301
    %v305 = vld [vmem:[#allocation2 + $0x8] sm:$0xff]
    %v306 = vld [vmem:[#allocation4] sm:$0xff]
    %v307 = vld [vmem:[%s2] sm:$0xff]
    %v308 = vld [vmem:[%s2 + $0x8] sm:$0xff]
    %v309 = vld [vmem:[%s2 + $0x10] sm:$0xff]
    %v310 = vld [vmem:[%s2 + $0x18] sm:$0xff]
    %v312 = vsel %vm182, %v306, 0
    %314 = vmatprep.subr.mxu0 0.0
    %315 = vmatpush1.msra.mxu0 %v307
    %316 = vmatprep.subr.mxu0 0.0
    %317 = vmatpush1.msra.mxu0 %v308
    %318 = vmatprep.subr.mxu0 0.0
    %319 = vmatpush1.msra.mxu0 %v309
    %320 = vmatprep.subr.mxu0 0.0
    %321 = vmatpush1.msra.mxu0 %v310
    %322 = vmatprep.subr.mxu0 0.0
    %323 = vmatpush1.msra.mxu0 0.0
    %324 = vmatprep.subr.mxu0 0.0
    %325 = vmatpush1.msra.mxu0 0.0
    %326 = vmatprep.subr.mxu0 0.0
    %327 = vmatpush1.msra.mxu0 0.0
    %328 = vmatprep.subr.mxu0 0.0
    %329 = vmatpush1.msra.mxu0 0.0
    %330 = vmatprep.subr.mxu0 0.0
    %331 = vmatpush1.msra.mxu0 0.0
    %332 = vmatprep.subr.mxu0 0.0
    %333 = vmatpush1.msra.mxu0 0.0
    %334 = vmatprep.subr.mxu0 0.0
    %335 = vmatpush1.msra.mxu0 0.0
    %336 = vmatprep.subr.mxu0 0.0
    %337 = vmatpush1.msra.mxu0 0.0
    %338 = vmatprep.subr.mxu0 0.0
    %339 = vmatpush1.msra.mxu0 0.0
    %340 = vmatprep.subr.mxu0 0.0
    %341 = vmatpush1.msra.mxu0 0.0
    %342 = vmatprep.subr.mxu0 0.0
    %343 = vmatpush1.msra.mxu0 0.0
    %344 = vmatprep.subr.mxu0 0.0
    %345 = vmatpush1.msra.mxu0 0.0
    %346 = vmatprep.subr.mxu0 0.0
    %347 = vmatpush1.msra.mxu0 0.0
    %348 = vmatprep.subr.mxu0 0.0
    %349 = vmatpush1.msra.mxu0 0.0
    %350 = vmatprep.subr.mxu0 0.0
    %351 = vmatpush1.msra.mxu0 0.0
    %352 = vmatprep.subr.mxu0 0.0
    %353 = vmatpush1.msra.mxu0 0.0
    %354 = vmatprep.subr.mxu0 0.0
    %355 = vmatpush1.msra.mxu0 0.0
    %356 = vmatprep.subr.mxu0 0.0
    %357 = vmatpush1.msra.mxu0 0.0
    %358 = vmatprep.subr.mxu0 0.0
    %359 = vmatpush1.msra.mxu0 0.0
    %360 = vmatprep.subr.mxu0 0.0
    %361 = vmatpush1.msra.mxu0 0.0
    %362 = vmatprep.subr.mxu0 0.0
    %363 = vmatpush1.msra.mxu0 0.0
    %364 = vmatprep.subr.mxu0 0.0
    %365 = vmatpush1.msra.mxu0 0.0
    %366 = vmatprep.subr.mxu0 0.0
    %367 = vmatpush1.msra.mxu0 0.0
    %368 = vmatprep.subr.mxu0 0.0
    %369 = vmatpush1.msra.mxu0 0.0
    %370 = vmatprep.subr.mxu0 0.0
    %371 = vmatpush1.msra.mxu0 0.0
    %372 = vmatprep.subr.mxu0 0.0
    %373 = vmatpush1.msra.mxu0 0.0
    %374 = vmatprep.subr.mxu0 0.0
    %375 = vmatpush1.msra.mxu0 0.0
    %376 = vmatprep.subr.mxu0 0.0
    %377 = vmatpush1.msra.mxu0 0.0
    %378 = vmatprep.mubr.f32.mxu0 0.0
    %379 = vmatmul.mubr.f32.gmra.mrb[0].mxu0 %v312
    %v380 = vpop.f32.mrb[0].mxu0
    %v381 = vadd.f32 0.0, %v380
    %v382 = vpop.f32.mrb[0].mxu0
    %383 = vdwg.mxu0
    %v384 = vadd.f32 %v305, %v381
    %v385 = vxor.u32 %v384, 2147483648
    %v386 = vmul.f32 %v385, 1.442695
    %v387 = vpow.pop %v386
    %v388 = vadd.f32 %v387, 1.0
    %v389 = vrcp.pop %v388
    %v390 = vmul.f32 1.0, %v389
    %v391 = vtanh.pop %v384
    %v392 = vld [vmem:[#allocation5] sm:$0xff]
    %394 = vrot.lane.b32.xlu0 %v392, 32
    %v395 = vpop.permute.xlu0 %394
    %v397 = vmul.f32 %v390, %v395
    %399 = vrot.lane.b32.xlu0 %v391, 64
    %v400 = vpop.permute.xlu0 %399
    %v402 = vmul.f32 %v390, %v400
    %404 = vrot.lane.b32.xlu0 %v402, 32
    %v405 = vpop.permute.xlu0 %404
    %v407 = vadd.f32 %v397, %v405
    %v408 = vtanh.pop %v407
    %410 = vrot.lane.b32.xlu0 %v408, 64
    %v411 = vpop.permute.xlu0 %410
    %v413 = vmul.f32 %v390, %v411
    %415 = vrot.lane.b32.xlu0 %v407, 96
    %v416 = vpop.permute.xlu0 %415
    %418 = vst.msk [vmem:[#allocation5] sm:$0xff] %vm182, %v416
    %420 = vrot.lane.b32.xlu0 %v413, 32
    %v421 = vpop.permute.xlu0 %420
    %423 = vst.msk [vmem:[#allocation4] sm:$0xff] %vm182, %v421
    %424 = vst.msk [vmem:[#allocation3 + $0x8] sm:$0xff] %vm182, %v421
    %v425 = vld [vmem:[#allocation2 + $0x10] sm:$0xff]
    %v426 = vld [vmem:[#allocation4] sm:$0xff]
    %v427 = vld [vmem:[%s2] sm:$0xff]
    %v428 = vld [vmem:[%s2 + $0x8] sm:$0xff]
    %v429 = vld [vmem:[%s2 + $0x10] sm:$0xff]
    %v430 = vld [vmem:[%s2 + $0x18] sm:$0xff]
    %v432 = vsel %vm182, %v426, 0
    %434 = vmatprep.subr.mxu0 0.0
    %435 = vmatpush1.msra.mxu0 %v427
    %436 = vmatprep.subr.mxu0 0.0
    %437 = vmatpush1.msra.mxu0 %v428
    %438 = vmatprep.subr.mxu0 0.0
    %439 = vmatpush1.msra.mxu0 %v429
    %440 = vmatprep.subr.mxu0 0.0
    %441 = vmatpush1.msra.mxu0 %v430
    %442 = vmatprep.subr.mxu0 0.0
    %443 = vmatpush1.msra.mxu0 0.0
    %444 = vmatprep.subr.mxu0 0.0
    %445 = vmatpush1.msra.mxu0 0.0
    %446 = vmatprep.subr.mxu0 0.0
    %447 = vmatpush1.msra.mxu0 0.0
    %448 = vmatprep.subr.mxu0 0.0
    %449 = vmatpush1.msra.mxu0 0.0
    %450 = vmatprep.subr.mxu0 0.0
    %451 = vmatpush1.msra.mxu0 0.0
    %452 = vmatprep.subr.mxu0 0.0
    %453 = vmatpush1.msra.mxu0 0.0
    %454 = vmatprep.subr.mxu0 0.0
    %455 = vmatpush1.msra.mxu0 0.0
    %456 = vmatprep.subr.mxu0 0.0
    %457 = vmatpush1.msra.mxu0 0.0
    %458 = vmatprep.subr.mxu0 0.0
    %459 = vmatpush1.msra.mxu0 0.0
    %460 = vmatprep.subr.mxu0 0.0
    %461 = vmatpush1.msra.mxu0 0.0
    %462 = vmatprep.subr.mxu0 0.0
    %463 = vmatpush1.msra.mxu0 0.0
    %464 = vmatprep.subr.mxu0 0.0
    %465 = vmatpush1.msra.mxu0 0.0
    %466 = vmatprep.subr.mxu0 0.0
    %467 = vmatpush1.msra.mxu0 0.0
    %468 = vmatprep.subr.mxu0 0.0
    %469 = vmatpush1.msra.mxu0 0.0
    %470 = vmatprep.subr.mxu0 0.0
    %471 = vmatpush1.msra.mxu0 0.0
    %472 = vmatprep.subr.mxu0 0.0
    %473 = vmatpush1.msra.mxu0 0.0
    %474 = vmatprep.subr.mxu0 0.0
    %475 = vmatpush1.msra.mxu0 0.0
    %476 = vmatprep.subr.mxu0 0.0
    %477 = vmatpush1.msra.mxu0 0.0
    %478 = vmatprep.subr.mxu0 0.0
    %479 = vmatpush1.msra.mxu0 0.0
    %480 = vmatprep.subr.mxu0 0.0
    %481 = vmatpush1.msra.mxu0 0.0
    %482 = vmatprep.subr.mxu0 0.0
    %483 = vmatpush1.msra.mxu0 0.0
    %484 = vmatprep.subr.mxu0 0.0
    %485 = vmatpush1.msra.mxu0 0.0
    %486 = vmatprep.subr.mxu0 0.0
    %487 = vmatpush1.msra.mxu0 0.0
    %488 = vmatprep.subr.mxu0 0.0
    %489 = vmatpush1.msra.mxu0 0.0
    %490 = vmatprep.subr.mxu0 0.0
    %491 = vmatpush1.msra.mxu0 0.0
    %492 = vmatprep.subr.mxu0 0.0
    %493 = vmatpush1.msra.mxu0 0.0
    %494 = vmatprep.subr.mxu0 0.0
    %495 = vmatpush1.msra.mxu0 0.0
    %496 = vmatprep.subr.mxu0 0.0
    %497 = vmatpush1.msra.mxu0 0.0
    %498 = vmatprep.mubr.f32.mxu0 0.0
    %499 = vmatmul.mubr.f32.gmra.mrb[0].mxu0 %v432
    %v500 = vpop.f32.mrb[0].mxu0
    %v501 = vadd.f32 0.0, %v500
    %v502 = vpop.f32.mrb[0].mxu0
    %503 = vdwg.mxu0
    %v504 = vadd.f32 %v425, %v501
    %v505 = vxor.u32 %v504, 2147483648
    %v506 = vmul.f32 %v505, 1.442695
    %v507 = vpow.pop %v506
    %v508 = vadd.f32 %v507, 1.0
    %v509 = vrcp.pop %v508
    %v510 = vmul.f32 1.0, %v509
    %v511 = vtanh.pop %v504
    %v512 = vld [vmem:[#allocation5] sm:$0xff]
    %514 = vrot.lane.b32.xlu0 %v512, 32
    %v515 = vpop.permute.xlu0 %514
    %v517 = vmul.f32 %v510, %v515
    %519 = vrot.lane.b32.xlu0 %v511, 64
    %v520 = vpop.permute.xlu0 %519
    %v522 = vmul.f32 %v510, %v520
    %524 = vrot.lane.b32.xlu0 %v522, 32
    %v525 = vpop.permute.xlu0 %524
    %v527 = vadd.f32 %v517, %v525
    %v528 = vtanh.pop %v527
    %530 = vrot.lane.b32.xlu0 %v528, 64
    %v531 = vpop.permute.xlu0 %530
    %v533 = vmul.f32 %v510, %v531
    %535 = vrot.lane.b32.xlu0 %v527, 96
    %v536 = vpop.permute.xlu0 %535
    %538 = vst.msk [vmem:[#allocation5] sm:$0xff] %vm182, %v536
    %540 = vrot.lane.b32.xlu0 %v533, 32
    %v541 = vpop.permute.xlu0 %540
    %543 = vst.msk [vmem:[#allocation4] sm:$0xff] %vm182, %v541
    %544 = vst.msk [vmem:[#allocation3 + $0x10] sm:$0xff] %vm182, %v541
    %v545 = vld [vmem:[#allocation2 + $0x18] sm:$0xff]
    %v546 = vld [vmem:[#allocation4] sm:$0xff]
    %v547 = vld [vmem:[%s2] sm:$0xff]
    %v548 = vld [vmem:[%s2 + $0x8] sm:$0xff]
    %v549 = vld [vmem:[%s2 + $0x10] sm:$0xff]
    %v550 = vld [vmem:[%s2 + $0x18] sm:$0xff]
    %v552 = vsel %vm182, %v546, 0
    %554 = vmatprep.subr.mxu0 0.0
    %555 = vmatpush1.msra.mxu0 %v547
    %556 = vmatprep.subr.mxu0 0.0
    %557 = vmatpush1.msra.mxu0 %v548
    %558 = vmatprep.subr.mxu0 0.0
    %559 = vmatpush1.msra.mxu0 %v549
    %560 = vmatprep.subr.mxu0 0.0
    %561 = vmatpush1.msra.mxu0 %v550
    %562 = vmatprep.subr.mxu0 0.0
    %563 = vmatpush1.msra.mxu0 0.0
    %564 = vmatprep.subr.mxu0 0.0
    %565 = vmatpush1.msra.mxu0 0.0
    %566 = vmatprep.subr.mxu0 0.0
    %567 = vmatpush1.msra.mxu0 0.0
    %568 = vmatprep.subr.mxu0 0.0
    %569 = vmatpush1.msra.mxu0 0.0
    %570 = vmatprep.subr.mxu0 0.0
    %571 = vmatpush1.msra.mxu0 0.0
    %572 = vmatprep.subr.mxu0 0.0
    %573 = vmatpush1.msra.mxu0 0.0
    %574 = vmatprep.subr.mxu0 0.0
    %575 = vmatpush1.msra.mxu0 0.0
    %576 = vmatprep.subr.mxu0 0.0
    %577 = vmatpush1.msra.mxu0 0.0
    %578 = vmatprep.subr.mxu0 0.0
    %579 = vmatpush1.msra.mxu0 0.0
    %580 = vmatprep.subr.mxu0 0.0
    %581 = vmatpush1.msra.mxu0 0.0
    %582 = vmatprep.subr.mxu0 0.0
    %583 = vmatpush1.msra.mxu0 0.0
    %584 = vmatprep.subr.mxu0 0.0
    %585 = vmatpush1.msra.mxu0 0.0
    %586 = vmatprep.subr.mxu0 0.0
    %587 = vmatpush1.msra.mxu0 0.0
    %588 = vmatprep.subr.mxu0 0.0
    %589 = vmatpush1.msra.mxu0 0.0
    %590 = vmatprep.subr.mxu0 0.0
    %591 = vmatpush1.msra.mxu0 0.0
    %592 = vmatprep.subr.mxu0 0.0
    %593 = vmatpush1.msra.mxu0 0.0
    %594 = vmatprep.subr.mxu0 0.0
    %595 = vmatpush1.msra.mxu0 0.0
    %596 = vmatprep.subr.mxu0 0.0
    %597 = vmatpush1.msra.mxu0 0.0
    %598 = vmatprep.subr.mxu0 0.0
    %599 = vmatpush1.msra.mxu0 0.0
    %600 = vmatprep.subr.mxu0 0.0
    %601 = vmatpush1.msra.mxu0 0.0
    %602 = vmatprep.subr.mxu0 0.0
    %603 = vmatpush1.msra.mxu0 0.0
    %604 = vmatprep.subr.mxu0 0.0
    %605 = vmatpush1.msra.mxu0 0.0
    %606 = vmatprep.subr.mxu0 0.0
    %607 = vmatpush1.msra.mxu0 0.0
    %608 = vmatprep.subr.mxu0 0.0
    %609 = vmatpush1.msra.mxu0 0.0
    %610 = vmatprep.subr.mxu0 0.0
    %611 = vmatpush1.msra.mxu0 0.0
    %612 = vmatprep.subr.mxu0 0.0
    %613 = vmatpush1.msra.mxu0 0.0
    %614 = vmatprep.subr.mxu0 0.0
    %615 = vmatpush1.msra.mxu0 0.0
    %616 = vmatprep.subr.mxu0 0.0
    %617 = vmatpush1.msra.mxu0 0.0
    %618 = vmatprep.mubr.f32.mxu0 0.0
    %619 = vmatmul.mubr.f32.gmra.mrb[0].mxu0 %v552
    %v620 = vpop.f32.mrb[0].mxu0
    %v621 = vadd.f32 0.0, %v620
    %v622 = vpop.f32.mrb[0].mxu0
    %623 = vdwg.mxu0
    %v624 = vadd.f32 %v545, %v621
    %v625 = vxor.u32 %v624, 2147483648
    %v626 = vmul.f32 %v625, 1.442695
    %v627 = vpow.pop %v626
    %v628 = vadd.f32 %v627, 1.0
    %v629 = vrcp.pop %v628
    %v630 = vmul.f32 1.0, %v629
    %v631 = vtanh.pop %v624
    %v632 = vld [vmem:[#allocation5] sm:$0xff]
    %634 = vrot.lane.b32.xlu0 %v632, 32
    %v635 = vpop.permute.xlu0 %634
    %v637 = vmul.f32 %v630, %v635
    %639 = vrot.lane.b32.xlu0 %v631, 64
    %v640 = vpop.permute.xlu0 %639
    %v642 = vmul.f32 %v630, %v640
    %644 = vrot.lane.b32.xlu0 %v642, 32
    %v645 = vpop.permute.xlu0 %644
    %v647 = vadd.f32 %v637, %v645
    %v648 = vtanh.pop %v647
    %650 = vrot.lane.b32.xlu0 %v648, 64
    %v651 = vpop.permute.xlu0 %650
    %v653 = vmul.f32 %v630, %v651
    %655 = vrot.lane.b32.xlu0 %v647, 96
    %v656 = vpop.permute.xlu0 %655
    %658 = vst.msk [vmem:[#allocation5] sm:$0xff] %vm182, %v656
    %660 = vrot.lane.b32.xlu0 %v653, 32
    %v661 = vpop.permute.xlu0 %660
    %663 = vst.msk [vmem:[#allocation4] sm:$0xff] %vm182, %v661
    %664 = vst.msk [vmem:[#allocation3 + $0x18] sm:$0xff] %vm182, %v661
    %v665 = vld [vmem:[#allocation2 + $0x20] sm:$0xff]
    %v666 = vld [vmem:[#allocation4] sm:$0xff]
    %v667 = vld [vmem:[%s2] sm:$0xff]
    %v668 = vld [vmem:[%s2 + $0x8] sm:$0xff]
    %v669 = vld [vmem:[%s2 + $0x10] sm:$0xff]
    %v670 = vld [vmem:[%s2 + $0x18] sm:$0xff]
    %v672 = vsel %vm182, %v666, 0
    %674 = vmatprep.subr.mxu0 0.0
    %675 = vmatpush1.msra.mxu0 %v667
    %676 = vmatprep.subr.mxu0 0.0
    %677 = vmatpush1.msra.mxu0 %v668
    %678 = vmatprep.subr.mxu0 0.0
    %679 = vmatpush1.msra.mxu0 %v669
    %680 = vmatprep.subr.mxu0 0.0
    %681 = vmatpush1.msra.mxu0 %v670
    %682 = vmatprep.subr.mxu0 0.0
    %683 = vmatpush1.msra.mxu0 0.0
    %684 = vmatprep.subr.mxu0 0.0
    %685 = vmatpush1.msra.mxu0 0.0
    %686 = vmatprep.subr.mxu0 0.0
    %687 = vmatpush1.msra.mxu0 0.0
    %688 = vmatprep.subr.mxu0 0.0
    %689 = vmatpush1.msra.mxu0 0.0
    %690 = vmatprep.subr.mxu0 0.0
    %691 = vmatpush1.msra.mxu0 0.0
    %692 = vmatprep.subr.mxu0 0.0
    %693 = vmatpush1.msra.mxu0 0.0
    %694 = vmatprep.subr.mxu0 0.0
    %695 = vmatpush1.msra.mxu0 0.0
    %696 = vmatprep.subr.mxu0 0.0
    %697 = vmatpush1.msra.mxu0 0.0
    %698 = vmatprep.subr.mxu0 0.0
    %699 = vmatpush1.msra.mxu0 0.0
    %700 = vmatprep.subr.mxu0 0.0
    %701 = vmatpush1.msra.mxu0 0.0
    %702 = vmatprep.subr.mxu0 0.0
    %703 = vmatpush1.msra.mxu0 0.0
    %704 = vmatprep.subr.mxu0 0.0
    %705 = vmatpush1.msra.mxu0 0.0
    %706 = vmatprep.subr.mxu0 0.0
    %707 = vmatpush1.msra.mxu0 0.0
    %708 = vmatprep.subr.mxu0 0.0
    %709 = vmatpush1.msra.mxu0 0.0
    %710 = vmatprep.subr.mxu0 0.0
    %711 = vmatpush1.msra.mxu0 0.0
    %712 = vmatprep.subr.mxu0 0.0
    %713 = vmatpush1.msra.mxu0 0.0
    %714 = vmatprep.subr.mxu0 0.0
    %715 = vmatpush1.msra.mxu0 0.0
    %716 = vmatprep.subr.mxu0 0.0
    %717 = vmatpush1.msra.mxu0 0.0
    %718 = vmatprep.subr.mxu0 0.0
    %719 = vmatpush1.msra.mxu0 0.0
    %720 = vmatprep.subr.mxu0 0.0
    %721 = vmatpush1.msra.mxu0 0.0
    %722 = vmatprep.subr.mxu0 0.0
    %723 = vmatpush1.msra.mxu0 0.0
    %724 = vmatprep.subr.mxu0 0.0
    %725 = vmatpush1.msra.mxu0 0.0
    %726 = vmatprep.subr.mxu0 0.0
    %727 = vmatpush1.msra.mxu0 0.0
    %728 = vmatprep.subr.mxu0 0.0
    %729 = vmatpush1.msra.mxu0 0.0
    %730 = vmatprep.subr.mxu0 0.0
    %731 = vmatpush1.msra.mxu0 0.0
    %732 = vmatprep.subr.mxu0 0.0
    %733 = vmatpush1.msra.mxu0 0.0
    %734 = vmatprep.subr.mxu0 0.0
    %735 = vmatpush1.msra.mxu0 0.0
    %736 = vmatprep.subr.mxu0 0.0
    %737 = vmatpush1.msra.mxu0 0.0
    %738 = vmatprep.mubr.f32.mxu0 0.0
    %739 = vmatmul.mubr.f32.gmra.mrb[0].mxu0 %v672
    %v740 = vpop.f32.mrb[0].mxu0
    %v741 = vadd.f32 0.0, %v740
    %v742 = vpop.f32.mrb[0].mxu0
    %743 = vdwg.mxu0
    %v744 = vadd.f32 %v665, %v741
    %v745 = vxor.u32 %v744, 2147483648
    %v746 = vmul.f32 %v745, 1.442695
    %v747 = vpow.pop %v746
    %v748 = vadd.f32 %v747, 1.0
    %v749 = vrcp.pop %v748
    %v750 = vmul.f32 1.0, %v749
    %v751 = vtanh.pop %v744
    %v752 = vld [vmem:[#allocation5] sm:$0xff]
    %754 = vrot.lane.b32.xlu0 %v752, 32
    %v755 = vpop.permute.xlu0 %754
    %v757 = vmul.f32 %v750, %v755
    %759 = vrot.lane.b32.xlu0 %v751, 64
    %v760 = vpop.permute.xlu0 %759
    %v762 = vmul.f32 %v750, %v760
    %764 = vrot.lane.b32.xlu0 %v762, 32
    %v765 = vpop.permute.xlu0 %764
    %v767 = vadd.f32 %v757, %v765
    %v768 = vtanh.pop %v767
    %770 = vrot.lane.b32.xlu0 %v768, 64
    %v771 = vpop.permute.xlu0 %770
    %v773 = vmul.f32 %v750, %v771
    %775 = vrot.lane.b32.xlu0 %v767, 96
    %v776 = vpop.permute.xlu0 %775
    %778 = vst.msk [vmem:[#allocation5] sm:$0xff] %vm182, %v776
    %780 = vrot.lane.b32.xlu0 %v773, 32
    %v781 = vpop.permute.xlu0 %780
    %783 = vst.msk [vmem:[#allocation4] sm:$0xff] %vm182, %v781
    %784 = vst.msk [vmem:[#allocation3 + $0x20] sm:$0xff] %vm182, %v781
    %v785 = vld [vmem:[#allocation2 + $0x28] sm:$0xff]
    %v786 = vld [vmem:[#allocation4] sm:$0xff]
    %v787 = vld [vmem:[%s2] sm:$0xff]
    %v788 = vld [vmem:[%s2 + $0x8] sm:$0xff]
    %v789 = vld [vmem:[%s2 + $0x10] sm:$0xff]
    %v790 = vld [vmem:[%s2 + $0x18] sm:$0xff]
    %v792 = vsel %vm182, %v786, 0
    %794 = vmatprep.subr.mxu0 0.0
    %795 = vmatpush1.msra.mxu0 %v787
    %796 = vmatprep.subr.mxu0 0.0
    %797 = vmatpush1.msra.mxu0 %v788
    %798 = vmatprep.subr.mxu0 0.0
    %799 = vmatpush1.msra.mxu0 %v789
    %800 = vmatprep.subr.mxu0 0.0
    %801 = vmatpush1.msra.mxu0 %v790
    %802 = vmatprep.subr.mxu0 0.0
    %803 = vmatpush1.msra.mxu0 0.0
    %804 = vmatprep.subr.mxu0 0.0
    %805 = vmatpush1.msra.mxu0 0.0
    %806 = vmatprep.subr.mxu0 0.0
    %807 = vmatpush1.msra.mxu0 0.0
    %808 = vmatprep.subr.mxu0 0.0
    %809 = vmatpush1.msra.mxu0 0.0
    %810 = vmatprep.subr.mxu0 0.0
    %811 = vmatpush1.msra.mxu0 0.0
    %812 = vmatprep.subr.mxu0 0.0
    %813 = vmatpush1.msra.mxu0 0.0
    %814 = vmatprep.subr.mxu0 0.0
    %815 = vmatpush1.msra.mxu0 0.0
    %816 = vmatprep.subr.mxu0 0.0
    %817 = vmatpush1.msra.mxu0 0.0
    %818 = vmatprep.subr.mxu0 0.0
    %819 = vmatpush1.msra.mxu0 0.0
    %820 = vmatprep.subr.mxu0 0.0
    %821 = vmatpush1.msra.mxu0 0.0
    %822 = vmatprep.subr.mxu0 0.0
    %823 = vmatpush1.msra.mxu0 0.0
    %824 = vmatprep.subr.mxu0 0.0
    %825 = vmatpush1.msra.mxu0 0.0
    %826 = vmatprep.subr.mxu0 0.0
    %827 = vmatpush1.msra.mxu0 0.0
    %828 = vmatprep.subr.mxu0 0.0
    %829 = vmatpush1.msra.mxu0 0.0
    %830 = vmatprep.subr.mxu0 0.0
    %831 = vmatpush1.msra.mxu0 0.0
    %832 = vmatprep.subr.mxu0 0.0
    %833 = vmatpush1.msra.mxu0 0.0
    %834 = vmatprep.subr.mxu0 0.0
    %835 = vmatpush1.msra.mxu0 0.0
    %836 = vmatprep.subr.mxu0 0.0
    %837 = vmatpush1.msra.mxu0 0.0
    %838 = vmatprep.subr.mxu0 0.0
    %839 = vmatpush1.msra.mxu0 0.0
    %840 = vmatprep.subr.mxu0 0.0
    %841 = vmatpush1.msra.mxu0 0.0
    %842 = vmatprep.subr.mxu0 0.0
    %843 = vmatpush1.msra.mxu0 0.0
    %844 = vmatprep.subr.mxu0 0.0
    %845 = vmatpush1.msra.mxu0 0.0
    %846 = vmatprep.subr.mxu0 0.0
    %847 = vmatpush1.msra.mxu0 0.0
    %848 = vmatprep.subr.mxu0 0.0
    %849 = vmatpush1.msra.mxu0 0.0
    %850 = vmatprep.subr.mxu0 0.0
    %851 = vmatpush1.msra.mxu0 0.0
    %852 = vmatprep.subr.mxu0 0.0
    %853 = vmatpush1.msra.mxu0 0.0
    %854 = vmatprep.subr.mxu0 0.0
    %855 = vmatpush1.msra.mxu0 0.0
    %856 = vmatprep.subr.mxu0 0.0
    %857 = vmatpush1.msra.mxu0 0.0
    %858 = vmatprep.mubr.f32.mxu0 0.0
    %859 = vmatmul.mubr.f32.gmra.mrb[0].mxu0 %v792
    %v860 = vpop.f32.mrb[0].mxu0
    %v861 = vadd.f32 0.0, %v860
    %v862 = vpop.f32.mrb[0].mxu0
    %863 = vdwg.mxu0
    %v864 = vadd.f32 %v785, %v861
    %v865 = vxor.u32 %v864, 2147483648
    %v866 = vmul.f32 %v865, 1.442695
    %v867 = vpow.pop %v866
    %v868 = vadd.f32 %v867, 1.0
    %v869 = vrcp.pop %v868
    %v870 = vmul.f32 1.0, %v869
    %v871 = vtanh.pop %v864
    %v872 = vld [vmem:[#allocation5] sm:$0xff]
    %874 = vrot.lane.b32.xlu0 %v872, 32
    %v875 = vpop.permute.xlu0 %874
    %v877 = vmul.f32 %v870, %v875
    %879 = vrot.lane.b32.xlu0 %v871, 64
    %v880 = vpop.permute.xlu0 %879
    %v882 = vmul.f32 %v870, %v880
    %884 = vrot.lane.b32.xlu0 %v882, 32
    %v885 = vpop.permute.xlu0 %884
    %v887 = vadd.f32 %v877, %v885
    %v888 = vtanh.pop %v887
    %890 = vrot.lane.b32.xlu0 %v888, 64
    %v891 = vpop.permute.xlu0 %890
    %v893 = vmul.f32 %v870, %v891
    %895 = vrot.lane.b32.xlu0 %v887, 96
    %v896 = vpop.permute.xlu0 %895
    %898 = vst.msk [vmem:[#allocation5] sm:$0xff] %vm182, %v896
    %900 = vrot.lane.b32.xlu0 %v893, 32
    %v901 = vpop.permute.xlu0 %900
    %903 = vst.msk [vmem:[#allocation4] sm:$0xff] %vm182, %v901
    %904 = vst.msk [vmem:[#allocation3 + $0x28] sm:$0xff] %vm182, %v901
    %v905 = vld [vmem:[#allocation2 + $0x30] sm:$0xff]
    %v906 = vld [vmem:[#allocation4] sm:$0xff]
    %v907 = vld [vmem:[%s2] sm:$0xff]
    %v908 = vld [vmem:[%s2 + $0x8] sm:$0xff]
    %v909 = vld [vmem:[%s2 + $0x10] sm:$0xff]
    %v910 = vld [vmem:[%s2 + $0x18] sm:$0xff]
    %v912 = vsel %vm182, %v906, 0
    %914 = vmatprep.subr.mxu0 0.0
    %915 = vmatpush1.msra.mxu0 %v907
    %916 = vmatprep.subr.mxu0 0.0
    %917 = vmatpush1.msra.mxu0 %v908
    %918 = vmatprep.subr.mxu0 0.0
    %919 = vmatpush1.msra.mxu0 %v909
    %920 = vmatprep.subr.mxu0 0.0
    %921 = vmatpush1.msra.mxu0 %v910
    %922 = vmatprep.subr.mxu0 0.0
    %923 = vmatpush1.msra.mxu0 0.0
    %924 = vmatprep.subr.mxu0 0.0
    %925 = vmatpush1.msra.mxu0 0.0
    %926 = vmatprep.subr.mxu0 0.0
    %927 = vmatpush1.msra.mxu0 0.0
    %928 = vmatprep.subr.mxu0 0.0
    %929 = vmatpush1.msra.mxu0 0.0
    %930 = vmatprep.subr.mxu0 0.0
    %931 = vmatpush1.msra.mxu0 0.0
    %932 = vmatprep.subr.mxu0 0.0
    %933 = vmatpush1.msra.mxu0 0.0
    %934 = vmatprep.subr.mxu0 0.0
    %935 = vmatpush1.msra.mxu0 0.0
    %936 = vmatprep.subr.mxu0 0.0
    %937 = vmatpush1.msra.mxu0 0.0
    %938 = vmatprep.subr.mxu0 0.0
    %939 = vmatpush1.msra.mxu0 0.0
    %940 = vmatprep.subr.mxu0 0.0
    %941 = vmatpush1.msra.mxu0 0.0
    %942 = vmatprep.subr.mxu0 0.0
    %943 = vmatpush1.msra.mxu0 0.0
    %944 = vmatprep.subr.mxu0 0.0
    %945 = vmatpush1.msra.mxu0 0.0
    %946 = vmatprep.subr.mxu0 0.0
    %947 = vmatpush1.msra.mxu0 0.0
    %948 = vmatprep.subr.mxu0 0.0
    %949 = vmatpush1.msra.mxu0 0.0
    %950 = vmatprep.subr.mxu0 0.0
    %951 = vmatpush1.msra.mxu0 0.0
    %952 = vmatprep.subr.mxu0 0.0
    %953 = vmatpush1.msra.mxu0 0.0
    %954 = vmatprep.subr.mxu0 0.0
    %955 = vmatpush1.msra.mxu0 0.0
    %956 = vmatprep.subr.mxu0 0.0
    %957 = vmatpush1.msra.mxu0 0.0
    %958 = vmatprep.subr.mxu0 0.0
    %959 = vmatpush1.msra.mxu0 0.0
    %960 = vmatprep.subr.mxu0 0.0
    %961 = vmatpush1.msra.mxu0 0.0
    %962 = vmatprep.subr.mxu0 0.0
    %963 = vmatpush1.msra.mxu0 0.0
    %964 = vmatprep.subr.mxu0 0.0
    %965 = vmatpush1.msra.mxu0 0.0
    %966 = vmatprep.subr.mxu0 0.0
    %967 = vmatpush1.msra.mxu0 0.0
    %968 = vmatprep.subr.mxu0 0.0
    %969 = vmatpush1.msra.mxu0 0.0
    %970 = vmatprep.subr.mxu0 0.0
    %971 = vmatpush1.msra.mxu0 0.0
    %972 = vmatprep.subr.mxu0 0.0
    %973 = vmatpush1.msra.mxu0 0.0
    %974 = vmatprep.subr.mxu0 0.0
    %975 = vmatpush1.msra.mxu0 0.0
    %976 = vmatprep.subr.mxu0 0.0
    %977 = vmatpush1.msra.mxu0 0.0
    %978 = vmatprep.mubr.f32.mxu0 0.0
    %979 = vmatmul.mubr.f32.gmra.mrb[0].mxu0 %v912
    %v980 = vpop.f32.mrb[0].mxu0
    %v981 = vadd.f32 0.0, %v980
    %v982 = vpop.f32.mrb[0].mxu0
    %983 = vdwg.mxu0
    %v984 = vadd.f32 %v905, %v981
    %v985 = vxor.u32 %v984, 2147483648
    %v986 = vmul.f32 %v985, 1.442695
    %v987 = vpow.pop %v986
    %v988 = vadd.f32 %v987, 1.0
    %v989 = vrcp.pop %v988
    %v990 = vmul.f32 1.0, %v989
    %v991 = vtanh.pop %v984
    %v992 = vld [vmem:[#allocation5] sm:$0xff]
    %994 = vrot.lane.b32.xlu0 %v992, 32
    %v995 = vpop.permute.xlu0 %994
    %v997 = vmul.f32 %v990, %v995
    %999 = vrot.lane.b32.xlu0 %v991, 64
    %v1000 = vpop.permute.xlu0 %999
    %v1002 = vmul.f32 %v990, %v1000
    %1004 = vrot.lane.b32.xlu0 %v1002, 32
    %v1005 = vpop.permute.xlu0 %1004
    %v1007 = vadd.f32 %v997, %v1005
    %v1008 = vtanh.pop %v1007
    %1010 = vrot.lane.b32.xlu0 %v1008, 64
    %v1011 = vpop.permute.xlu0 %1010
    %v1013 = vmul.f32 %v990, %v1011
    %1015 = vrot.lane.b32.xlu0 %v1007, 96
    %v1016 = vpop.permute.xlu0 %1015
    %1018 = vst.msk [vmem:[#allocation5] sm:$0xff] %vm182, %v1016
    %1020 = vrot.lane.b32.xlu0 %v1013, 32
    %v1021 = vpop.permute.xlu0 %1020
    %1023 = vst.msk [vmem:[#allocation4] sm:$0xff] %vm182, %v1021
    %1024 = vst.msk [vmem:[#allocation3 + $0x30] sm:$0xff] %vm182, %v1021
    %v1025 = vld [vmem:[#allocation2 + $0x38] sm:$0xff]
    %v1026 = vld [vmem:[#allocation4] sm:$0xff]
    %v1027 = vld [vmem:[%s2] sm:$0xff]
    %v1028 = vld [vmem:[%s2 + $0x8] sm:$0xff]
    %v1029 = vld [vmem:[%s2 + $0x10] sm:$0xff]
    %v1030 = vld [vmem:[%s2 + $0x18] sm:$0xff]
    %v1032 = vsel %vm182, %v1026, 0
    %1034 = vmatprep.subr.mxu0 0.0
    %1035 = vmatpush1.msra.mxu0 %v1027
    %1036 = vmatprep.subr.mxu0 0.0
    %1037 = vmatpush1.msra.mxu0 %v1028
    %1038 = vmatprep.subr.mxu0 0.0
    %1039 = vmatpush1.msra.mxu0 %v1029
    %1040 = vmatprep.subr.mxu0 0.0
    %1041 = vmatpush1.msra.mxu0 %v1030
    %1042 = vmatprep.subr.mxu0 0.0
    %1043 = vmatpush1.msra.mxu0 0.0
    %1044 = vmatprep.subr.mxu0 0.0
    %1045 = vmatpush1.msra.mxu0 0.0
    %1046 = vmatprep.subr.mxu0 0.0
    %1047 = vmatpush1.msra.mxu0 0.0
    %1048 = vmatprep.subr.mxu0 0.0
    %1049 = vmatpush1.msra.mxu0 0.0
    %1050 = vmatprep.subr.mxu0 0.0
    %1051 = vmatpush1.msra.mxu0 0.0
    %1052 = vmatprep.subr.mxu0 0.0
    %1053 = vmatpush1.msra.mxu0 0.0
    %1054 = vmatprep.subr.mxu0 0.0
    %1055 = vmatpush1.msra.mxu0 0.0
    %1056 = vmatprep.subr.mxu0 0.0
    %1057 = vmatpush1.msra.mxu0 0.0
    %1058 = vmatprep.subr.mxu0 0.0
    %1059 = vmatpush1.msra.mxu0 0.0
    %1060 = vmatprep.subr.mxu0 0.0
    %1061 = vmatpush1.msra.mxu0 0.0
    %1062 = vmatprep.subr.mxu0 0.0
    %1063 = vmatpush1.msra.mxu0 0.0
    %1064 = vmatprep.subr.mxu0 0.0
    %1065 = vmatpush1.msra.mxu0 0.0
    %1066 = vmatprep.subr.mxu0 0.0
    %1067 = vmatpush1.msra.mxu0 0.0
    %1068 = vmatprep.subr.mxu0 0.0
    %1069 = vmatpush1.msra.mxu0 0.0
    %1070 = vmatprep.subr.mxu0 0.0
    %1071 = vmatpush1.msra.mxu0 0.0
    %1072 = vmatprep.subr.mxu0 0.0
    %1073 = vmatpush1.msra.mxu0 0.0
    %1074 = vmatprep.subr.mxu0 0.0
    %1075 = vmatpush1.msra.mxu0 0.0
    %1076 = vmatprep.subr.mxu0 0.0
    %1077 = vmatpush1.msra.mxu0 0.0
    %1078 = vmatprep.subr.mxu0 0.0
    %1079 = vmatpush1.msra.mxu0 0.0
    %1080 = vmatprep.subr.mxu0 0.0
    %1081 = vmatpush1.msra.mxu0 0.0
    %1082 = vmatprep.subr.mxu0 0.0
    %1083 = vmatpush1.msra.mxu0 0.0
    %1084 = vmatprep.subr.mxu0 0.0
    %1085 = vmatpush1.msra.mxu0 0.0
    %1086 = vmatprep.subr.mxu0 0.0
    %1087 = vmatpush1.msra.mxu0 0.0
    %1088 = vmatprep.subr.mxu0 0.0
    %1089 = vmatpush1.msra.mxu0 0.0
    %1090 = vmatprep.subr.mxu0 0.0
    %1091 = vmatpush1.msra.mxu0 0.0
    %1092 = vmatprep.subr.mxu0 0.0
    %1093 = vmatpush1.msra.mxu0 0.0
    %1094 = vmatprep.subr.mxu0 0.0
    %1095 = vmatpush1.msra.mxu0 0.0
    %1096 = vmatprep.subr.mxu0 0.0
    %1097 = vmatpush1.msra.mxu0 0.0
    %1098 = vmatprep.mubr.f32.mxu0 0.0
    %1099 = vmatmul.mubr.f32.gmra.mrb[0].mxu0 %v1032
    %v1100 = vpop.f32.mrb[0].mxu0
    %v1101 = vadd.f32 0.0, %v1100
    %v1102 = vpop.f32.mrb[0].mxu0
    %1103 = vdwg.mxu0
    %v1104 = vadd.f32 %v1025, %v1101
    %v1105 = vxor.u32 %v1104, 2147483648
    %v1106 = vmul.f32 %v1105, 1.442695
    %v1107 = vpow.pop %v1106
    %v1108 = vadd.f32 %v1107, 1.0
    %v1109 = vrcp.pop %v1108
    %v1110 = vmul.f32 1.0, %v1109
    %v1111 = vtanh.pop %v1104
    %v1112 = vld [vmem:[#allocation5] sm:$0xff]
    %1114 = vrot.lane.b32.xlu0 %v1112, 32
    %v1115 = vpop.permute.xlu0 %1114
    %v1117 = vmul.f32 %v1110, %v1115
    %1119 = vrot.lane.b32.xlu0 %v1111, 64
    %v1120 = vpop.permute.xlu0 %1119
    %v1122 = vmul.f32 %v1110, %v1120
    %1124 = vrot.lane.b32.xlu0 %v1122, 32
    %v1125 = vpop.permute.xlu0 %1124
    %v1127 = vadd.f32 %v1117, %v1125
    %v1128 = vtanh.pop %v1127
    %1130 = vrot.lane.b32.xlu0 %v1128, 64
    %v1131 = vpop.permute.xlu0 %1130
    %v1133 = vmul.f32 %v1110, %v1131
    %1135 = vrot.lane.b32.xlu0 %v1127, 96
    %v1136 = vpop.permute.xlu0 %1135
    %1138 = vst.msk [vmem:[#allocation5] sm:$0xff] %vm182, %v1136
    %1140 = vrot.lane.b32.xlu0 %v1133, 32
    %v1141 = vpop.permute.xlu0 %1140
    %1143 = vst.msk [vmem:[#allocation4] sm:$0xff] %vm182, %v1141
    %1144 = vst.msk [vmem:[#allocation3 + $0x38] sm:$0xff] %vm182, %v1141
    %v1145 = vld [vmem:[#allocation3] sm:$0xff]
    %v1146 = vld [vmem:[#allocation3 + $0x8] sm:$0xff]
    %v1147 = vld [vmem:[#allocation3 + $0x10] sm:$0xff]
    %v1148 = vld [vmem:[#allocation3 + $0x18] sm:$0xff]
    %v1149 = vld [vmem:[#allocation3 + $0x20] sm:$0xff]
    %v1150 = vld [vmem:[#allocation3 + $0x28] sm:$0xff]
    %v1151 = vld [vmem:[#allocation3 + $0x30] sm:$0xff]
    %v1152 = vld [vmem:[#allocation3 + $0x38] sm:$0xff]
    %v1153 = vld [vmem:[%s4] sm:$0xff]
    %v1154 = vld [vmem:[%s4 + $0x8] sm:$0xff]
    %v1155 = vld [vmem:[%s4 + $0x10] sm:$0xff]
    %v1156 = vld [vmem:[%s4 + $0x18] sm:$0xff]
    %v1157 = vld [vmem:[%s4 + $0x20] sm:$0xff]
    %v1158 = vld [vmem:[%s4 + $0x28] sm:$0xff]
    %v1159 = vld [vmem:[%s4 + $0x30] sm:$0xff]
    %v1160 = vld [vmem:[%s4 + $0x38] sm:$0xff]
    %v1161 = vmul.f32 %v1145, %v1153
    %v1162 = vmul.f32 %v1146, %v1154
    %v1163 = vmul.f32 %v1147, %v1155
    %v1164 = vmul.f32 %v1148, %v1156
    %v1165 = vmul.f32 %v1149, %v1157
    %v1166 = vmul.f32 %v1150, %v1158
    %v1167 = vmul.f32 %v1151, %v1159
    %v1168 = vmul.f32 %v1152, %v1160
    %v1169 = vmax.f32 %v1161, 0.0
    %v1170 = vmax.f32 %v1162, 0.0
    %v1171 = vmax.f32 %v1163, 0.0
    %v1172 = vmax.f32 %v1164, 0.0
    %v1173 = vmax.f32 %v1165, 0.0
    %v1174 = vmax.f32 %v1166, 0.0
    %v1175 = vmax.f32 %v1167, 0.0
    %v1176 = vmax.f32 %v1168, 0.0
    %v1177 = vld [vmem:[%s5] sm:$0xff]
    %v1178 = vld [vmem:[%s5 + $0x8] sm:$0xff]
    %v1179 = vld [vmem:[%s5 + $0x10] sm:$0xff]
    %v1180 = vld [vmem:[%s5 + $0x18] sm:$0xff]
    %v1181 = vld [vmem:[%s6] sm:$0x1]
    %v1183 = vlaneseq
    %v1184 = vshrl.u32 %v1183, 7
    %v1185 = vsub.s32 0, %v1184
    %v1186 = vrot.slane %v1181, %v1185
    %v1189 = vsel %vm182, %v1169, 0
    %v1192 = vsel %vm182, %v1170, 0
    %v1195 = vsel %vm182, %v1171, 0
    %v1198 = vsel %vm182, %v1172, 0
    %v1201 = vsel %vm182, %v1173, 0
    %v1204 = vsel %vm182, %v1174, 0
    %v1207 = vsel %vm182, %v1175, 0
    %v1210 = vsel %vm182, %v1176, 0
    %1212 = vmatprep.subr.mxu0 0.0
    %1213 = vmatpush1.msra.mxu0 %v1177
    %1214 = vmatprep.subr.mxu0 0.0
    %1215 = vmatpush1.msra.mxu0 %v1178
    %1216 = vmatprep.subr.mxu0 0.0
    %1217 = vmatpush1.msra.mxu0 %v1179
    %1218 = vmatprep.subr.mxu0 0.0
    %1219 = vmatpush1.msra.mxu0 %v1180
    %1220 = vmatprep.subr.mxu0 0.0
    %1221 = vmatpush1.msra.mxu0 0.0
    %1222 = vmatprep.subr.mxu0 0.0
    %1223 = vmatpush1.msra.mxu0 0.0
    %1224 = vmatprep.subr.mxu0 0.0
    %1225 = vmatpush1.msra.mxu0 0.0
    %1226 = vmatprep.subr.mxu0 0.0
    %1227 = vmatpush1.msra.mxu0 0.0
    %1228 = vmatprep.subr.mxu0 0.0
    %1229 = vmatpush1.msra.mxu0 0.0
    %1230 = vmatprep.subr.mxu0 0.0
    %1231 = vmatpush1.msra.mxu0 0.0
    %1232 = vmatprep.subr.mxu0 0.0
    %1233 = vmatpush1.msra.mxu0 0.0
    %1234 = vmatprep.subr.mxu0 0.0
    %1235 = vmatpush1.msra.mxu0 0.0
    %1236 = vmatprep.subr.mxu0 0.0
    %1237 = vmatpush1.msra.mxu0 0.0
    %1238 = vmatprep.subr.mxu0 0.0
    %1239 = vmatpush1.msra.mxu0 0.0
    %1240 = vmatprep.subr.mxu0 0.0
    %1241 = vmatpush1.msra.mxu0 0.0
    %1242 = vmatprep.subr.mxu0 0.0
    %1243 = vmatpush1.msra.mxu0 0.0
    %1244 = vmatprep.subr.mxu0 0.0
    %1245 = vmatpush1.msra.mxu0 0.0
    %1246 = vmatprep.subr.mxu0 0.0
    %1247 = vmatpush1.msra.mxu0 0.0
    %1248 = vmatprep.subr.mxu0 0.0
    %1249 = vmatpush1.msra.mxu0 0.0
    %1250 = vmatprep.subr.mxu0 0.0
    %1251 = vmatpush1.msra.mxu0 0.0
    %1252 = vmatprep.subr.mxu0 0.0
    %1253 = vmatpush1.msra.mxu0 0.0
    %1254 = vmatprep.subr.mxu0 0.0
    %1255 = vmatpush1.msra.mxu0 0.0
    %1256 = vmatprep.subr.mxu0 0.0
    %1257 = vmatpush1.msra.mxu0 0.0
    %1258 = vmatprep.subr.mxu0 0.0
    %1259 = vmatpush1.msra.mxu0 0.0
    %1260 = vmatprep.subr.mxu0 0.0
    %1261 = vmatpush1.msra.mxu0 0.0
    %1262 = vmatprep.subr.mxu0 0.0
    %1263 = vmatpush1.msra.mxu0 0.0
    %1264 = vmatprep.subr.mxu0 0.0
    %1265 = vmatpush1.msra.mxu0 0.0
    %1266 = vmatprep.subr.mxu0 0.0
    %1267 = vmatpush1.msra.mxu0 0.0
    %1268 = vmatprep.subr.mxu0 0.0
    %1269 = vmatpush1.msra.mxu0 0.0
    %1270 = vmatprep.subr.mxu0 0.0
    %1271 = vmatpush1.msra.mxu0 0.0
    %1272 = vmatprep.subr.mxu0 0.0
    %1273 = vmatpush1.msra.mxu0 0.0
    %1274 = vmatprep.subr.mxu0 0.0
    %1275 = vmatpush1.msra.mxu0 0.0
    %1276 = vmatprep.mubr.f32.mxu0 0.0
    %1277 = vmatmul.mubr.f32.gmra.mrb[0].mxu0 %v1189
    %v1278 = vpop.f32.mrb[0].mxu0
    %v1279 = vadd.f32 %v1186, %v1278
    %v1280 = vpop.f32.mrb[0].mxu0
    %1281 = vmatprep.mubr.f32.mxu0 0.0
    %1282 = vmatmul.mubr.f32.gmra.mrb[0].mxu0 %v1192
    %v1283 = vpop.f32.mrb[0].mxu0
    %v1284 = vadd.f32 %v1186, %v1283
    %v1285 = vpop.f32.mrb[0].mxu0
    %1286 = vmatprep.mubr.f32.mxu0 0.0
    %1287 = vmatmul.mubr.f32.gmra.mrb[0].mxu0 %v1195
    %v1288 = vpop.f32.mrb[0].mxu0
    %v1289 = vadd.f32 %v1186, %v1288
    %v1290 = vpop.f32.mrb[0].mxu0
    %1291 = vmatprep.mubr.f32.mxu0 0.0
    %1292 = vmatmul.mubr.f32.gmra.mrb[0].mxu0 %v1198
    %v1293 = vpop.f32.mrb[0].mxu0
    %v1294 = vadd.f32 %v1186, %v1293
    %v1295 = vpop.f32.mrb[0].mxu0
    %1296 = vmatprep.mubr.f32.mxu0 0.0
    %1297 = vmatmul.mubr.f32.gmra.mrb[0].mxu0 %v1201
    %v1298 = vpop.f32.mrb[0].mxu0
    %v1299 = vadd.f32 %v1186, %v1298
    %v1300 = vpop.f32.mrb[0].mxu0
    %1301 = vmatprep.mubr.f32.mxu0 0.0
    %1302 = vmatmul.mubr.f32.gmra.mrb[0].mxu0 %v1204
    %v1303 = vpop.f32.mrb[0].mxu0
    %v1304 = vadd.f32 %v1186, %v1303
    %v1305 = vpop.f32.mrb[0].mxu0
    %1306 = vmatprep.mubr.f32.mxu0 0.0
    %1307 = vmatmul.mubr.f32.gmra.mrb[0].mxu0 %v1207
    %v1308 = vpop.f32.mrb[0].mxu0
    %v1309 = vadd.f32 %v1186, %v1308
    %v1310 = vpop.f32.mrb[0].mxu0
    %1311 = vmatprep.mubr.f32.mxu0 0.0
    %1312 = vmatmul.mubr.f32.gmra.mrb[0].mxu0 %v1210
    %v1313 = vpop.f32.mrb[0].mxu0
    %v1314 = vadd.f32 %v1186, %v1313
    %v1315 = vpop.f32.mrb[0].mxu0
    %1316 = vdwg.mxu0
    %1317 = vst [vmem:[#allocation6] sm:$0xff] %v1279
    %1318 = vst [vmem:[#allocation6 + $0x8] sm:$0xff] %v1284
    %1319 = vst [vmem:[#allocation6 + $0x10] sm:$0xff] %v1289
    %1320 = vst [vmem:[#allocation6 + $0x18] sm:$0xff] %v1294
    %1321 = vst [vmem:[#allocation6 + $0x20] sm:$0xff] %v1299
    %1322 = vst [vmem:[#allocation6 + $0x28] sm:$0xff] %v1304
    %1323 = vst [vmem:[#allocation6 + $0x30] sm:$0xff] %v1309
    %1324 = vst [vmem:[#allocation6 + $0x38] sm:$0xff] %v1314
    // Predicated region
    $region30: #{tpu_custom_call.1} parent=1 // pred_check
      _
    $region31: #{tpu_custom_call.1} parent=1 // pred_check_branch
      %1326 = sbr.rel (0) target = $region33
    $region32: #{tpu_custom_call.1} parent=1 // pred_region
      %s1328 = ssub.s32 1024, 1024
      %1329 = vsyncadd [#allocation7], %s1328
      %s1330 = sshll.u32 [#allocation6], 4
      %s1331 = int_to_ptr.vmem [resolvable:$true] %s1330
      %1336 = dma.vmem_to_hbm [thread:$0]  %s1331, 1024, %s7, [#allocation7], 128, 128, 8
    $region33: #{tpu_custom_call.1} parent=1 // pred_fallthru
      _
    // Predicated region
    $region34: #{tpu_custom_call.1} parent=1 // pred_check
      _
    $region35: #{tpu_custom_call.1} parent=1 // pred_check_branch
      %1338 = sbr.rel (0) target = $region37
    $region36: #{tpu_custom_call.1} parent=1 // pred_region
      %1339 = dma.done [#allocation7], 1024
    $region37: #{tpu_custom_call.1} parent=1 // pred_fallthru
      _
    %1340 = vsyncpa [#allocation7], 1

</llo_original>
